<compile_context>
chip_gen: v6e
topology: v6e:2x2x1
jax: 0.10.0
libtpu: 0.0.40
codegen_flags: <defaults>
</compile_context>

<pallas_src>
import jax
import jax.numpy as jnp
from jax.experimental import pallas as pl
from jax.experimental.pallas import tpu as pltpu


# ----------------------------------------------------------------------------
# Helpers: pick lane-aligned tiles that evenly divide the axis.
# ----------------------------------------------------------------------------
def _aligned_tile(size, max_tile):
    """Largest multiple of 128 that divides `size` and is <= max_tile, else `size`."""
    if size % 128 != 0:
        return size
    t = min(size, max_tile)
    t -= t % 128
    while size % t != 0:
        t -= 128
    return t


# ----------------------------------------------------------------------------
# Fused 3x3 conv (pad=1) + bias + ReLU + 2x2 MaxPool.
#
# The wrapper builds the tap-im2col operand per pooling parity:
#   patches[n, parity, tap*Cin + ci, i*Wh + j] = xpad[n, ci, 2i+a+dh, 2j+b+dw]
# so the kernel is 4 dense GEMMs (K = 9*Cin, N = spatial tile) + a running max.
# relu(max(.)+bias) == max(. + bias) then relu, so bias/ReLU are applied once.
# ----------------------------------------------------------------------------
def conv_relu_pool_kernel(p_ref, w_ref, b_ref, out_ref):
    # p_ref  : (1, 4, 9*Cin, TS)   im2col patches (spatial on lanes)
    # w_ref  : (Cout, 9*Cin)
    # b_ref  : (Cout, 1)
    # out_ref: (1, Cout, TS)
    w = w_ref[...]
    pooled = jnp.dot(w, p_ref[0, 0], preferred_element_type=jnp.float32)
    for par in range(1, 4):
        pooled = jnp.maximum(
            pooled, jnp.dot(w, p_ref[0, par], preferred_element_type=jnp.float32)
        )
    out_ref[0] = jnp.maximum(pooled + b_ref[...], 0.0).astype(out_ref.dtype)


def conv_relu_pool(x_nchw, w_torch, b_torch):
    """x_nchw: (N,Cin,H,W) f32; w_torch: (Cout,Cin,3,3); b_torch: (Cout,).
    Returns pooled activations in NCHW: (N, Cout, H//2, W//2)."""
    n, cin, h, w = x_nchw.shape
    cout = w_torch.shape[0]
    hh, wh = h // 2, w // 2          # assumes H, W even (true for 480x640 at all stages)
    s = hh * wh
    k9 = 9 * cin

    # TODO(synk): the im2col below is materialized by XLA in the wrapper; fusing the
    # pad/de-interleave into the previous conv's out_specs would remove one extra
    # HBM round trip per layer.
    xpad = jnp.pad(x_nchw, ((0, 0), (0, 0), (1, 1), (1, 1)))
    parities = []
    for a in range(2):
        for b in range(2):
            taps = []
            for dh in range(3):
                for dw in range(3):
                    taps.append(
                        xpad[:, :, a + dh: a + dh + 2 * hh: 2,
                                   b + dw: b + dw + 2 * wh: 2]      # (n, cin, hh, wh)
                    )
            parities.append(jnp.stack(taps, axis=1))                # (n, 9, cin, hh, wh)
    patches = jnp.stack(parities, axis=1).reshape(n, 4, k9, s)      # (n, 4, 9*cin, s)

    wk = jnp.transpose(w_torch, (0, 2, 3, 1)).reshape(cout, k9)     # (cout, (dh,dw,ci))
    bk = b_torch.reshape(cout, 1)

    ts = _aligned_tile(s, 2048)
    grid = (n, s // ts)

    out = pl.pallas_call(
        conv_relu_pool_kernel,
        out_shape=jax.ShapeDtypeStruct((n, cout, s), jnp.float32),
        grid_spec=pltpu.PrefetchScalarGridSpec(
            num_scalar_prefetch=0,
            grid=grid,
            in_specs=[
                pl.BlockSpec((1, 4, k9, ts), lambda i, j: (i, 0, 0, j)),
                pl.BlockSpec((cout, k9), lambda i, j: (0, 0)),
                pl.BlockSpec((cout, 1), lambda i, j: (0, 0)),
            ],
            out_specs=pl.BlockSpec((1, cout, ts), lambda i, j: (i, 0, j)),
        ),
        compiler_params=pltpu.CompilerParams(
            dimension_semantics=("parallel", "parallel"),
            vmem_limit_bytes=32 * 1024 * 1024,
        ),
    )(patches, wk, bk)

    return out.reshape(n, cout, hh, wh)


# ----------------------------------------------------------------------------
# FC stack: Linear -> ReLU -> Dropout(eval) -> Linear.
# FC1 contraction is K-tiled (grid over K); w1 is streamed from HBM block by block
# into a pipelined (TK,128) tile, accumulated into a VMEM f32 scratch; bias+ReLU,
# FC2 and bias2 are applied once on the last K step.
# ----------------------------------------------------------------------------
def fc_kernel(x_ref, w1_ref, b1_ref, w2_ref, b2_ref, o_ref, acc_ref):
    k = pl.program_id(0)

    @pl.when(k == 0)
    def _():
        acc_ref[...] = jnp.zeros_like(acc_ref)

    acc_ref[...] += jnp.dot(x_ref[...], w1_ref[...],
                            preferred_element_type=jnp.float32)

    @pl.when(k == pl.num_programs(0) - 1)
    def _():
        hid = jnp.maximum(acc_ref[...] + b1_ref[...], 0.0)
        # TODO(synk): nn.Dropout(0.5) is identity in eval mode; training-mode RNG
        # masking (pltpu.prng_seed / prng_random_bits) not implemented.
        o_ref[...] = (jnp.dot(hid, w2_ref[...], preferred_element_type=jnp.float32)
                      + b2_ref[...]).astype(o_ref.dtype)


def fc_forward(x_flat, w1_torch, b1_torch, w2_torch, b2_torch):
    n, f = x_flat.shape
    h1 = w1_torch.shape[0]     # 128
    o = w2_torch.shape[0]      # 2

    tk = _aligned_tile(f, 2048)
    nk = f // tk

    ce = pl.CostEstimate(
        flops=2 * n * f * h1 + 2 * n * h1 * o,
        transcendentals=0,
        bytes_accessed=4 * (f * h1 + n * f + h1 * o + n * h1 + n * o),
    )

    return pl.pallas_call(
        fc_kernel,
        out_shape=jax.ShapeDtypeStruct((n, o), jnp.float32),
        grid_spec=pltpu.PrefetchScalarGridSpec(
            num_scalar_prefetch=0,
            grid=(nk,),
            in_specs=[
                pl.BlockSpec((n, tk), lambda k: (0, k)),      # activations, K-sliced
                pl.BlockSpec((tk, h1), lambda k: (k, 0)),     # w1, streamed along K
                pl.BlockSpec((1, h1), lambda k: (0, 0)),      # b1, VMEM-resident
                pl.BlockSpec((h1, o), lambda k: (0, 0)),      # w2, VMEM-resident
                pl.BlockSpec((1, o), lambda k: (0, 0)),       # b2, VMEM-resident
            ],
            out_specs=pl.BlockSpec((n, o), lambda k: (0, 0)),
            scratch_shapes=[pltpu.VMEM((n, h1), jnp.float32)],
        ),
        compiler_params=pltpu.CompilerParams(
            dimension_semantics=("arbitrary",),
            vmem_limit_bytes=32 * 1024 * 1024,
        ),
        cost_estimate=ce,
    )(x_flat, w1_torch.T, b1_torch.reshape(1, h1), w2_torch.T, b2_torch.reshape(1, o))


# ----------------------------------------------------------------------------
# Full forward pass (activations stay in NCHW the whole way -> flatten is free)
# ----------------------------------------------------------------------------
def location_cnn2_forward(x_nchw, params):
    x = conv_relu_pool(x_nchw, params["w_conv1"], params["b_conv1"])  # (N,16,H/2,W/2)
    x = conv_relu_pool(x, params["w_conv2"], params["b_conv2"])       # (N,32,H/4,W/4)
    x = conv_relu_pool(x, params["w_conv3"], params["b_conv3"])       # (N,64,H/8,W/8)
    x = x.reshape(x.shape[0], -1)                                     # NCHW flatten == torch .view
    return fc_forward(x, params["w_fc1"], params["b_fc1"],
                      params["w_fc2"], params["b_fc2"])


# ----------------------------------------------------------------------------
# Deterministic parameter init (PyTorch weight shape conventions)
# ----------------------------------------------------------------------------
def init_params(key, h, w):
    f_in = 64 * (h // 8) * (w // 8)
    ks = jax.random.split(key, 10)
    return {
        "w_conv1": 0.1 * jax.random.normal(ks[0], (16, 3, 3, 3), jnp.float32),
        "b_conv1": 0.1 * jax.random.normal(ks[1], (16,), jnp.float32),
        "w_conv2": 0.1 * jax.random.normal(ks[2], (32, 16, 3, 3), jnp.float32),
        "b_conv2": 0.1 * jax.random.normal(ks[3], (32,), jnp.float32),
        "w_conv3": 0.1 * jax.random.normal(ks[4], (64, 32, 3, 3), jnp.float32),
        "b_conv3": 0.1 * jax.random.normal(ks[5], (64,), jnp.float32),
        "w_fc1": 0.02 * jax.random.normal(ks[6], (128, f_in), jnp.float32),
        "b_fc1": 0.1 * jax.random.normal(ks[7], (128,), jnp.float32),
        "w_fc2": 0.1 * jax.random.normal(ks[8], (2, 128), jnp.float32),
        "b_fc2": 0.1 * jax.random.normal(ks[9], (2,), jnp.float32),
    }


# ----------------------------------------------------------------------------
# Pure-JAX reference for correctness check
# ----------------------------------------------------------------------------
def reference_forward(x_nchw, params):
    x = jnp.transpose(x_nchw, (0, 2, 3, 1))
    for wn, bn in (("w_conv1", "b_conv1"), ("w_conv2", "b_conv2"), ("w_conv3", "b_conv3")):
        wk = jnp.transpose(params[wn], (2, 3, 1, 0))   # HWIO
        x = jax.lax.conv_general_dilated(
            x, wk, (1, 1), "SAME", dimension_numbers=("NHWC", "HWIO", "NHWC")
        ) + params[bn]
        x = jnp.maximum(x, 0.0)
        x = jax.lax.reduce_window(x, -jnp.inf, jax.lax.max,
                                  (1, 2, 2, 1), (1, 2, 2, 1), "VALID")
    x = jnp.transpose(x, (0, 3, 1, 2)).reshape(x.shape[0], -1)
    h = jnp.maximum(x @ params["w_fc1"].T + params["b_fc1"], 0.0)
    return h @ params["w_fc2"].T + params["b_fc2"]


if __name__ == "__main__":
    key = jax.random.PRNGKey(0)
    kx, kp = jax.random.split(key)

    # Scaled-down input (original module implies 3x480x640); divisible by 8.
    N, C, H, W = 2, 3, 64, 64
    x = jax.random.normal(kx, (N, C, H, W), jnp.float32)
    params = init_params(kp, H, W)

    out = jax.block_until_ready(location_cnn2_forward(x, params))
    assert out.shape == (N, 2) and out.dtype == jnp.float32

    ref = reference_forward(x, params)
    max_err = float(jnp.max(jnp.abs(out - ref)))
    if max_err > 1e-2:
        raise AssertionError(f"Pallas output mismatch vs reference: max_err={max_err}")

    print("KERNEL_OK")
</pallas_src>

<mosaic_0001>
module attributes {stable_mosaic.version = 11 : i64} {
  func.func @conv_relu_pool_kernel(%arg0: i32, %arg1: i32, %arg2: memref<1x4x27x1024xf32, #tpu.memory_space<vmem>>, %arg3: memref<16x27xf32, #tpu.memory_space<vmem>>, %arg4: memref<16x1xf32, #tpu.memory_space<vmem>>, %arg5: memref<1x16x1024xf32, #tpu.memory_space<vmem>>) attributes {dimension_semantics = [#tpu.dimension_semantics<parallel>, #tpu.dimension_semantics<parallel>], iteration_bounds = array<i64: 2, 1>, scalar_prefetch = 0 : i64, scratch_operands = 0 : i64, tpu.core_type = #tpu.core_type<tc>, window_params = [{transform_indices = @transform_0, window_bounds = array<i64: 1, 4, 27, 1024>}, {pipeline_mode = #tpu.pipeline_mode<synchronous>, transform_indices = @transform_1, window_bounds = array<i64: 16, 27>}, {pipeline_mode = #tpu.pipeline_mode<synchronous>, transform_indices = @transform_2, window_bounds = array<i64: 16, 1>}, {transform_indices = @transform_3, window_bounds = array<i64: 1, 16, 1024>}]} {
    %c0 = arith.constant 0 : index
    %c0_0 = arith.constant 0 : index
    %0 = vector.load %arg3[%c0, %c0_0] : memref<16x27xf32, #tpu.memory_space<vmem>>, vector<16x27xf32>
    %c0_1 = arith.constant 0 : index
    %c0_2 = arith.constant 0 : index
    %c0_3 = arith.constant 0 : index
    %c0_4 = arith.constant 0 : index
    %1 = vector.load %arg2[%c0_1, %c0_2, %c0_3, %c0_4] : memref<1x4x27x1024xf32, #tpu.memory_space<vmem>>, vector<1x1x27x1024xf32>
    %2 = vector.shape_cast %1 : vector<1x1x27x1024xf32> to vector<27x1024xf32>
    %cst = arith.constant dense<0.000000e+00> : vector<16x1024xf32>
    %3 = tpu.matmul %0, %2, %cst {dimension_numbers = #tpu.dot_dimension_numbers<[1], [0], [0], [1], [0, 0, 1, 1], [], []>} : vector<16x27xf32>, vector<27x1024xf32>, vector<16x1024xf32> -> vector<16x1024xf32>
    %c0_5 = arith.constant 0 : index
    %c1 = arith.constant 1 : index
    %c0_6 = arith.constant 0 : index
    %c0_7 = arith.constant 0 : index
    %4 = vector.load %arg2[%c0_5, %c1, %c0_6, %c0_7] : memref<1x4x27x1024xf32, #tpu.memory_space<vmem>>, vector<1x1x27x1024xf32>
    %5 = vector.shape_cast %4 : vector<1x1x27x1024xf32> to vector<27x1024xf32>
    %cst_8 = arith.constant dense<0.000000e+00> : vector<16x1024xf32>
    %6 = tpu.matmul %0, %5, %cst_8 {dimension_numbers = #tpu.dot_dimension_numbers<[1], [0], [0], [1], [0, 0, 1, 1], [], []>} : vector<16x27xf32>, vector<27x1024xf32>, vector<16x1024xf32> -> vector<16x1024xf32>
    %7 = arith.maximumf %3, %6 : vector<16x1024xf32>
    %c0_9 = arith.constant 0 : index
    %c2 = arith.constant 2 : index
    %c0_10 = arith.constant 0 : index
    %c0_11 = arith.constant 0 : index
    %8 = vector.load %arg2[%c0_9, %c2, %c0_10, %c0_11] : memref<1x4x27x1024xf32, #tpu.memory_space<vmem>>, vector<1x1x27x1024xf32>
    %9 = vector.shape_cast %8 : vector<1x1x27x1024xf32> to vector<27x1024xf32>
    %cst_12 = arith.constant dense<0.000000e+00> : vector<16x1024xf32>
    %10 = tpu.matmul %0, %9, %cst_12 {dimension_numbers = #tpu.dot_dimension_numbers<[1], [0], [0], [1], [0, 0, 1, 1], [], []>} : vector<16x27xf32>, vector<27x1024xf32>, vector<16x1024xf32> -> vector<16x1024xf32>
    %11 = arith.maximumf %7, %10 : vector<16x1024xf32>
    %c0_13 = arith.constant 0 : index
    %c3 = arith.constant 3 : index
    %c0_14 = arith.constant 0 : index
    %c0_15 = arith.constant 0 : index
    %12 = vector.load %arg2[%c0_13, %c3, %c0_14, %c0_15] : memref<1x4x27x1024xf32, #tpu.memory_space<vmem>>, vector<1x1x27x1024xf32>
    %13 = vector.shape_cast %12 : vector<1x1x27x1024xf32> to vector<27x1024xf32>
    %cst_16 = arith.constant dense<0.000000e+00> : vector<16x1024xf32>
    %14 = tpu.matmul %0, %13, %cst_16 {dimension_numbers = #tpu.dot_dimension_numbers<[1], [0], [0], [1], [0, 0, 1, 1], [], []>} : vector<16x27xf32>, vector<27x1024xf32>, vector<16x1024xf32> -> vector<16x1024xf32>
    %15 = arith.maximumf %11, %14 : vector<16x1024xf32>
    %c0_17 = arith.constant 0 : index
    %c0_18 = arith.constant 0 : index
    %16 = vector.load %arg4[%c0_17, %c0_18] : memref<16x1xf32, #tpu.memory_space<vmem>>, vector<16x1xf32>
    %17 = vector.broadcast %16 : vector<16x1xf32> to vector<16x1024xf32>
    %18 = arith.addf %15, %17 : vector<16x1024xf32>
    %cst_19 = arith.constant 0.000000e+00 : f32
    %19 = vector.broadcast %cst_19 : f32 to vector<16x1024xf32>
    %20 = arith.maximumf %18, %19 : vector<16x1024xf32>
    %c0_20 = arith.constant 0 : index
    %c0_21 = arith.constant 0 : index
    %c0_22 = arith.constant 0 : index
    %21 = vector.load %arg5[%c0_20, %c0_21, %c0_22] : memref<1x16x1024xf32, #tpu.memory_space<vmem>>, vector<1x16x1024xf32>
    %22 = vector.shape_cast %21 : vector<1x16x1024xf32> to vector<16x1024xf32>
    %23 = vector.shape_cast %20 : vector<16x1024xf32> to vector<1x16x1024xf32>
    tpu.vector_store %arg5[%c0_20, %c0_21, %c0_22], %23 {strides = array<i32>} : memref<1x16x1024xf32, #tpu.memory_space<vmem>>, vector<1x16x1024xf32>,
    return
  }
  func.func @transform_0(%arg0: i32, %arg1: i32) -> (i32, i32, i32, i32) {
    %c0_i32 = arith.constant 0 : i32
    %c0_i32_0 = arith.constant 0 : i32
    %c0_i32_1 = arith.constant 0 : i32
    return %arg0, %c0_i32, %c0_i32_0, %arg1 : i32, i32, i32, i32
  }
  func.func @transform_1(%arg0: i32, %arg1: i32) -> (i32, i32) {
    %c0_i32 = arith.constant 0 : i32
    %c0_i32_0 = arith.constant 0 : i32
    %c0_i32_1 = arith.constant 0 : i32
    return %c0_i32, %c0_i32_0 : i32, i32
  }
  func.func @transform_2(%arg0: i32, %arg1: i32) -> (i32, i32) {
    %c0_i32 = arith.constant 0 : i32
    %c0_i32_0 = arith.constant 0 : i32
    %c0_i32_1 = arith.constant 0 : i32
    return %c0_i32, %c0_i32_0 : i32, i32
  }
  func.func @transform_3(%arg0: i32, %arg1: i32) -> (i32, i32, i32) {
    %c0_i32 = arith.constant 0 : i32
    %c0_i32_0 = arith.constant 0 : i32
    return %arg0, %c0_i32, %arg1 : i32, i32, i32
  }
}

</mosaic_0001>

<llo_original>
// kernel: tpu_custom_call.1
$region0: #{tpu_custom_call.1}
  #allocation0 [shape = 'u32[]', space=smem, size = 0x4, offset = 0x4, fixed_abs, tag = 'smem constant byte address 0x4 - core index']
  #allocation1 [shape = 'u32[144,128]{1,0:T(1,128)}', space=vmem, size = 0x12000, scoped, tag = 'internal scratch']
  %s0 = inlined_call_operand.vmem [shape: f32[2,4,27,1024], index: 0, kind: input, shape index: {}]
  %s1 = inlined_call_operand.vmem [shape: f32[16,27], index: 1, kind: input, shape index: {}]
  %s2 = inlined_call_operand.vmem [shape: f32[16,1], index: 2, kind: input, shape index: {}]
  %s3 = inlined_call_operand.hbm [shape: f32[2,16,1024], index: 3, kind: output, shape index: {}]
  %s4 = sld [smem:[#allocation0]]
  $region45: #{tpu_custom_call.1} parent=0
    _
  %s6 = ssub.s32 1, %s4
  %s7 = scalar_select 0, %s6, %s4
  $region1: #{tpu_custom_call.1} parent=0
    #allocation2 [shape = 'u8[131072]{0}', space=vmem, size = 0x20000, scoped, tag = 'output window, operand 0']
    #allocation3 [shape = 's32[2]{0}', space=sflag, size = 0x8, scoped, tag = 'scoped memory for tpu_custom_call.1']
    %8 = vsyncpa [#allocation3], 0
    %s9 = scalar_lea.sflag [#allocation3], 1
    %10 = vsyncpa %s9, 0
    loop: start=0, step=1, limit=4
    $region2: #{tpu_custom_call.1} parent=1 // loop_pre_header
      _
    $region3: #{tpu_custom_call.1} parent=1 // loop_header
      %s12 = sphi 0, %s16
      %p13 = scmp.ge.s32.totalorder %s12, 4
      %s19 = sphi 0, %s31
      %s20 = sphi 0, %s27
      %s21 = sphi 0, %s19
      %s22 = sphi 0, %s20
      %s23 = sphi 0, %s21
      %s24 = sphi 0, %s22
      %s36 = sphi 0, %s38
      %s39 = sphi 0, %s36
      %s40 = sphi 0, %s39
      %s56 = sphi 0, %s40
      %s60 = sphi 0, %s60
      %s62 = sphi 0, %s60
      %s63 = sphi 0, %s62
      %s77 = sphi 0, %s63
      %s81 = sphi 0, %s81
      %s83 = sphi 0, %s81
      %s84 = sphi 0, %s83
      %s98 = sphi 0, %s84
      %s106 = sphi 0, %s108
      %s109 = sphi 0, %s106
      %s110 = sphi 0, %s109
      %s126 = sphi 0, %s110
    $region4: #{tpu_custom_call.1} parent=1 // loop_header_branch
      %15 = sbr.rel (%p13) target = $region8
    $region5: #{tpu_custom_call.1} parent=1 // loop_body
      %s17 = ssub.s32 %s12, 1
      %s18 = ssub.s32 %s12, 2
      %s25 = sadd.s32 1, %s20
      %p26 = scmp.ge.s32.totalorder %s25, 1
      %s27 = scalar_select %p26, 0, %s25
      %s28 = sadd.s32 1, %s19
      %s29 = scalar_select %p26, %s28, %s19
      %p30 = scmp.ge.s32.totalorder %s29, 2
      %s31 = scalar_select %p30, 0, %s29
      %s32 = ssub.s32 %s19, %s31
      %s33 = ssub.s32 %s20, %s27
      %s34 = sor.u32 %s32, %s33
      %p35 = scmp.eq.s32.totalorder %s34, 0
      %s37 = sadd.s32 %s36, 1
      %s38 = scalar_select %p35, %s36, %s37
      %p41 = pneg %p35
      %p42 = scmp.eq.s32.totalorder %s12, 1
      %p43 = por %p41, %p42
      %p44 = scmp.ne.s32.totalorder %s36, %s39
      %p45 = scmp.eq.s32.totalorder %s12, 0
      %p46 = por %p44, %p45
      %p47 = scmp.ne.s32.totalorder %s36, %s39
      %p48 = scmp.eq.s32.totalorder %s17, 1
      %p49 = por %p47, %p48
      %p50 = scmp.ne.s32.totalorder %s39, %s40
      %p51 = scmp.eq.s32.totalorder %s17, 0
      %p52 = por %p50, %p51
      %p53 = scmp.ne.s32.totalorder %s39, %s40
      %p54 = scmp.eq.s32.totalorder %s18, 1
      %p55 = por %p53, %p54
      %p57 = scmp.ne.s32.totalorder %s40, %s56
      %p58 = scmp.eq.s32.totalorder %s18, 0
      %p59 = por %p57, %p58
      %s61 = sadd.s32 %s60, 1
      %p64 = scmp.eq.s32.totalorder %s12, 1
      %p65 = scmp.ne.s32.totalorder %s60, %s62
      %p66 = scmp.eq.s32.totalorder %s12, 0
      %p67 = por %p65, %p66
      %p68 = scmp.ne.s32.totalorder %s60, %s62
      %p69 = scmp.eq.s32.totalorder %s17, 1
      %p70 = por %p68, %p69
      %p71 = scmp.ne.s32.totalorder %s62, %s63
      %p72 = scmp.eq.s32.totalorder %s17, 0
      %p73 = por %p71, %p72
      %p74 = scmp.ne.s32.totalorder %s62, %s63
      %p75 = scmp.eq.s32.totalorder %s18, 1
      %p76 = por %p74, %p75
      %p78 = scmp.ne.s32.totalorder %s63, %s77
      %p79 = scmp.eq.s32.totalorder %s18, 0
      %p80 = por %p78, %p79
      %s82 = sadd.s32 %s81, 1
      %p85 = scmp.eq.s32.totalorder %s12, 1
      %p86 = scmp.ne.s32.totalorder %s81, %s83
      %p87 = scmp.eq.s32.totalorder %s12, 0
      %p88 = por %p86, %p87
      %p89 = scmp.ne.s32.totalorder %s81, %s83
      %p90 = scmp.eq.s32.totalorder %s17, 1
      %p91 = por %p89, %p90
      %p92 = scmp.ne.s32.totalorder %s83, %s84
      %p93 = scmp.eq.s32.totalorder %s17, 0
      %p94 = por %p92, %p93
      %p95 = scmp.ne.s32.totalorder %s83, %s84
      %p96 = scmp.eq.s32.totalorder %s18, 1
      %p97 = por %p95, %p96
      %p99 = scmp.ne.s32.totalorder %s84, %s98
      %p100 = scmp.eq.s32.totalorder %s18, 0
      %p101 = por %p99, %p100
      %s102 = ssub.s32 %s19, %s31
      %s103 = ssub.s32 %s20, %s27
      %s104 = sor.u32 %s102, %s103
      %p105 = scmp.eq.s32.totalorder %s104, 0
      %s107 = sadd.s32 %s106, 1
      %s108 = scalar_select %p105, %s106, %s107
      %p111 = pneg %p105
      %p112 = scmp.eq.s32.totalorder %s12, 1
      %p113 = por %p111, %p112
      %p114 = scmp.ne.s32.totalorder %s106, %s109
      %p115 = scmp.eq.s32.totalorder %s12, 0
      %p116 = por %p114, %p115
      %p117 = scmp.ne.s32.totalorder %s106, %s109
      %p118 = scmp.eq.s32.totalorder %s17, 1
      %p119 = por %p117, %p118
      %p120 = scmp.ne.s32.totalorder %s109, %s110
      %p121 = scmp.eq.s32.totalorder %s17, 0
      %p122 = por %p120, %p121
      %p123 = scmp.ne.s32.totalorder %s109, %s110
      %p124 = scmp.eq.s32.totalorder %s18, 1
      %p125 = por %p123, %p124
      %p127 = scmp.ne.s32.totalorder %s110, %s126
      %p128 = scmp.eq.s32.totalorder %s18, 0
      %p129 = por %p127, %p128
      %p130 = scmp.le.s32.totalorder 1, %s12
      %p131 = scmp.lt.s32.totalorder %s12, 3
      %p132 = pnand %p130, %p131
      %p133 = pneg %p132
      // Predicated region
      $region9: #{tpu_custom_call.1} parent=5 // pred_check
        _
      $region10: #{tpu_custom_call.1} parent=5 // pred_check_branch
        %135 = sbr.rel (%p132) target = $region12
      $region11: #{tpu_custom_call.1} parent=5 // pred_region
        %s136 = ssub.s32 %s12, 1
        // Predicated region
        $region13: #{tpu_custom_call.1} parent=11 // pred_check
          %p137 = pneg %p73
        $region14: #{tpu_custom_call.1} parent=11 // pred_check_branch
          %139 = sbr.rel (%p137) target = $region16
        $region15: #{tpu_custom_call.1} parent=11 // pred_region
          _
        $region16: #{tpu_custom_call.1} parent=11 // pred_fallthru
          _
        // Predicated region
        $region17: #{tpu_custom_call.1} parent=11 // pred_check
          %p140 = pneg %p94
        $region18: #{tpu_custom_call.1} parent=11 // pred_check_branch
          %142 = sbr.rel (%p140) target = $region20
        $region19: #{tpu_custom_call.1} parent=11 // pred_region
          _
        $region20: #{tpu_custom_call.1} parent=11 // pred_fallthru
          _
      $region12: #{tpu_custom_call.1} parent=5 // pred_fallthru
        _
      %p143 = scmp.lt.s32.totalorder %s12, 2
      // Predicated region
      $region21: #{tpu_custom_call.1} parent=5 // pred_check
        %p144 = pneg %p143
      $region22: #{tpu_custom_call.1} parent=5 // pred_check_branch
        %146 = sbr.rel (%p144) target = $region24
      $region23: #{tpu_custom_call.1} parent=5 // pred_region
        // Predicated region
        $region25: #{tpu_custom_call.1} parent=23 // pred_check
          %p147 = pneg %p46
        $region26: #{tpu_custom_call.1} parent=23 // pred_check_branch
          %149 = sbr.rel (%p147) target = $region28
        $region27: #{tpu_custom_call.1} parent=23 // pred_region
          %s150 = smul.u32 8, %s20
          %p151 = scmp.lt.s32.totalorder %s19, 1
          %s152 = scalar_select %p151, %s19, 1
          %p153 = scmp.lt.s32.totalorder %s150, 7
          %s154 = scalar_select %p153, %s150, 7
          %s155 = smul.addr %s152, 128
          %s156 = sadd.s32 %s154, %s155
          %s157 = smul.addr %s156, 8
          %s158 = scalar_lea.vmem %s0, %s157
          %s159 = smul.u32 8, %s20
        $region28: #{tpu_custom_call.1} parent=23 // pred_fallthru
          _
      $region24: #{tpu_custom_call.1} parent=5 // pred_fallthru
        _
      %p160 = scmp.le.s32.totalorder 1, %s12
      %p161 = scmp.lt.s32.totalorder %s12, 3
      %p162 = pnand %p160, %p161
      %p163 = pneg %p162
      // Predicated region
      $region29: #{tpu_custom_call.1} parent=5 // pred_check
        _
      $region30: #{tpu_custom_call.1} parent=5 // pred_check_branch
        %165 = sbr.rel (%p162) target = $region32
      $region31: #{tpu_custom_call.1} parent=5 // pred_region
        %s166 = ssub.s32 %s12, 1
        %s167 = smul.u32 8, %s22
        %p168 = scmp.lt.s32.totalorder %s21, 1
        %s169 = scalar_select %p168, %s21, 1
        %p170 = scmp.lt.s32.totalorder %s167, 7
        %s171 = scalar_select %p170, %s167, 7
        %s172 = smul.addr %s169, 128
        %s173 = sadd.s32 %s171, %s172
        %s174 = smul.addr %s173, 8
        %s175 = scalar_lea.vmem %s0, %s174
        %p176 = pneg %p52
        %p177 = pneg %p49
        %p178 = pneg %p73
        %p179 = pneg %p70
        %p180 = pneg %p94
        %p181 = pneg %p91
        %p182 = pneg %p122
        %p183 = pneg %p119
        %s184 = sand.u32 %s109, 1
        %s185 = scalar_lea.sflag [#allocation3], %s184
        %s186 = sand.u32 %s109, 1
        %s187 = smul.addr %s186, 128
        %s188 = scalar_lea.vmem [#allocation2], %s187
        %s189 = smul.u32 8, %s22
        %p190 = scmp.lt.s32.totalorder %s21, 1
        %s191 = scalar_select %p190, %s21, 1
        %p192 = scmp.lt.s32.totalorder %s189, 7
        %s193 = scalar_select %p192, %s189, 7
        %s194 = smul.addr %s191, 128
        %s195 = sadd.s32 %s193, %s194
        %s196 = smul.addr %s195, 8
        %s197 = scalar_lea.vmem %s0, %s196
        %s198 = smul.u32 8, %s22
        %s199 = smul.u32 8, %s22
        %v200 = vld [vmem:[%s1] sm:$0xff]
        %v201 = vld [vmem:[%s1 + $0x8] sm:$0xff]
        %v202 = vld [vmem:[%s197] sm:$0xff]
        %v203 = vld [vmem:[%s197 + $0x8] sm:$0xff]
        %v204 = vld [vmem:[%s197 + $0x10] sm:$0xff]
        %v205 = vld [vmem:[%s197 + $0x18] sm:$0xff]
        %v206 = vld [vmem:[%s197 + $0x20] sm:$0xff]
        %v207 = vld [vmem:[%s197 + $0x28] sm:$0xff]
        %v208 = vld [vmem:[%s197 + $0x30] sm:$0xff]
        %v209 = vld [vmem:[%s197 + $0x38] sm:$0xff]
        %v210 = vld [vmem:[%s197 + $0x40] sm:$0xff]
        %v211 = vld [vmem:[%s197 + $0x48] sm:$0xff]
        %v212 = vld [vmem:[%s197 + $0x50] sm:$0xff]
        %v213 = vld [vmem:[%s197 + $0x58] sm:$0xff]
        %v214 = vld [vmem:[%s197 + $0x60] sm:$0xff]
        %v215 = vld [vmem:[%s197 + $0x68] sm:$0xff]
        %v216 = vld [vmem:[%s197 + $0x70] sm:$0xff]
        %v217 = vld [vmem:[%s197 + $0x78] sm:$0xff]
        %v218 = vld [vmem:[%s197 + $0x80] sm:$0xff]
        %v219 = vld [vmem:[%s197 + $0x88] sm:$0xff]
        %v220 = vld [vmem:[%s197 + $0x90] sm:$0xff]
        %v221 = vld [vmem:[%s197 + $0x98] sm:$0xff]
        %v222 = vld [vmem:[%s197 + $0xa0] sm:$0xff]
        %v223 = vld [vmem:[%s197 + $0xa8] sm:$0xff]
        %v224 = vld [vmem:[%s197 + $0xb0] sm:$0xff]
        %v225 = vld [vmem:[%s197 + $0xb8] sm:$0xff]
        %v226 = vld [vmem:[%s197 + $0xc0] sm:$0x7]
        %v227 = vld [vmem:[%s197 + $0xc8] sm:$0x7]
        %v228 = vld [vmem:[%s197 + $0xd0] sm:$0x7]
        %v229 = vld [vmem:[%s197 + $0xd8] sm:$0x7]
        %v230 = vld [vmem:[%s197 + $0xe0] sm:$0x7]
        %v231 = vld [vmem:[%s197 + $0xe8] sm:$0x7]
        %v232 = vld [vmem:[%s197 + $0xf0] sm:$0x7]
        %v233 = vld [vmem:[%s197 + $0xf8] sm:$0x7]
        %vm234 = vcmask 220160
        %v236 = vsel %vm234, %v200, 0
        %v239 = vsel %vm234, %v201, 0
        %vm241 = vcmask 1042432
        %v243 = vsel %vm241, %v226, 0
        %v246 = vsel %vm241, %v227, 0
        %v249 = vsel %vm241, %v228, 0
        %v252 = vsel %vm241, %v229, 0
        %v255 = vsel %vm241, %v230, 0
        %v258 = vsel %vm241, %v231, 0
        %v261 = vsel %vm241, %v232, 0
        %v264 = vsel %vm241, %v233, 0
        %266 = vmatprep.subr.mxu0 0.0
        %267 = vmatpush1.msra.mxu0 0.0
        %268 = vmatprep.subr.mxu0 0.0
        %269 = vmatpush1.msra.mxu0 0.0
        %270 = vmatprep.subr.mxu0 0.0
        %271 = vmatpush1.msra.mxu0 0.0
        %272 = vmatprep.subr.mxu0 0.0
        %273 = vmatpush1.msra.mxu0 0.0
        %274 = vmatprep.subr.mxu0 0.0
        %275 = vmatpush1.msra.mxu0 0.0
        %276 = vmatprep.subr.mxu0 0.0
        %277 = vmatpush1.msra.mxu0 0.0
        %278 = vmatprep.subr.mxu0 0.0
        %279 = vmatpush1.msra.mxu0 0.0
        %280 = vmatprep.subr.mxu0 0.0
        %281 = vmatpush1.msra.mxu0 0.0
        %282 = vmatprep.subr.mxu0 0.0
        %283 = vmatpush1.msra.mxu0 0.0
        %284 = vmatprep.subr.mxu0 0.0
        %285 = vmatpush1.msra.mxu0 0.0
        %286 = vmatprep.subr.mxu0 0.0
        %287 = vmatpush1.msra.mxu0 0.0
        %288 = vmatprep.subr.mxu0 0.0
        %289 = vmatpush1.msra.mxu0 0.0
        %290 = vmatprep.subr.mxu0 %v246
        %291 = vmatpush1.msra.mxu0 %v243
        %292 = vmatprep.subr.mxu0 %v219
        %293 = vmatpush1.msra.mxu0 %v218
        %294 = vmatprep.subr.mxu0 %v211
        %295 = vmatpush1.msra.mxu0 %v210
        %296 = vmatprep.subr.mxu0 %v203
        %297 = vmatpush1.msra.mxu0 %v202
        %298 = vmatprep.subr.mxu0 0.0
        %299 = vmatpush2.msra.mxu0 0.0
        %300 = vmatprep.subr.mxu0 0.0
        %301 = vmatpush2.msra.mxu0 0.0
        %302 = vmatprep.subr.mxu0 0.0
        %303 = vmatpush2.msra.mxu0 0.0
        %304 = vmatprep.subr.mxu0 0.0
        %305 = vmatpush2.msra.mxu0 0.0
        %306 = vmatprep.subr.mxu0 0.0
        %307 = vmatpush2.msra.mxu0 0.0
        %308 = vmatprep.subr.mxu0 0.0
        %309 = vmatpush2.msra.mxu0 0.0
        %310 = vmatprep.subr.mxu0 0.0
        %311 = vmatpush2.msra.mxu0 0.0
        %312 = vmatprep.subr.mxu0 0.0
        %313 = vmatpush2.msra.mxu0 0.0
        %314 = vmatprep.subr.mxu0 0.0
        %315 = vmatpush2.msra.mxu0 0.0
        %316 = vmatprep.subr.mxu0 0.0
        %317 = vmatpush2.msra.mxu0 0.0
        %318 = vmatprep.subr.mxu0 0.0
        %319 = vmatpush2.msra.mxu0 0.0
        %320 = vmatprep.subr.mxu0 0.0
        %321 = vmatpush2.msra.mxu0 0.0
        %322 = vmatprep.subr.mxu0 0.0
        %323 = vmatpush2.msra.mxu0 0.0
        %324 = vmatprep.subr.mxu0 0.0
        %325 = vmatpush2.msra.mxu0 0.0
        %326 = vmatprep.subr.mxu0 0.0
        %327 = vmatpush2.msra.mxu0 0.0
        %328 = vmatprep.subr.mxu0 0.0
        %329 = vmatpush2.msra.mxu0 0.0
        %330 = vmatprep.mubr.f32.mxu0 0.0
        %331 = vmatmul.mubr.f32.gmra.mxu0 %v236
        %v332 = vpop.f32.mrf.mxu0
        %v333 = vadd.f32 0.0, %v332
        %v334 = vpop.f32.mrf.mxu0
        %v335 = vadd.f32 0.0, %v334
        %336 = vmatprep.mubr.f32.mxu0 0.0
        %337 = vmatmul.mubr.f32.gmra.mxu0 %v239
        %v338 = vpop.f32.mrf.mxu0
        %v339 = vadd.f32 0.0, %v338
        %v340 = vpop.f32.mrf.mxu0
        %v341 = vadd.f32 0.0, %v340
        %342 = vdwg.mxu0
        %343 = vmatprep.subr.mxu0 0.0
        %344 = vmatpush1.msra.mxu0 0.0
        %345 = vmatprep.subr.mxu0 0.0
        %346 = vmatpush1.msra.mxu0 0.0
        %347 = vmatprep.subr.mxu0 0.0
        %348 = vmatpush1.msra.mxu0 0.0
        %349 = vmatprep.subr.mxu0 0.0
        %350 = vmatpush1.msra.mxu0 0.0
        %351 = vmatprep.subr.mxu0 0.0
        %352 = vmatpush1.msra.mxu0 0.0
        %353 = vmatprep.subr.mxu0 0.0
        %354 = vmatpush1.msra.mxu0 0.0
        %355 = vmatprep.subr.mxu0 0.0
        %356 = vmatpush1.msra.mxu0 0.0
        %357 = vmatprep.subr.mxu0 0.0
        %358 = vmatpush1.msra.mxu0 0.0
        %359 = vmatprep.subr.mxu0 0.0
        %360 = vmatpush1.msra.mxu0 0.0
        %361 = vmatprep.subr.mxu0 0.0
        %362 = vmatpush1.msra.mxu0 0.0
        %363 = vmatprep.subr.mxu0 0.0
        %364 = vmatpush1.msra.mxu0 0.0
        %365 = vmatprep.subr.mxu0 0.0
        %366 = vmatpush1.msra.mxu0 0.0
        %367 = vmatprep.subr.mxu0 %v252
        %368 = vmatpush1.msra.mxu0 %v249
        %369 = vmatprep.subr.mxu0 %v221
        %370 = vmatpush1.msra.mxu0 %v220
        %371 = vmatprep.subr.mxu0 %v213
        %372 = vmatpush1.msra.mxu0 %v212
        %373 = vmatprep.subr.mxu0 %v205
        %374 = vmatpush1.msra.mxu0 %v204
        %375 = vmatprep.subr.mxu0 0.0
        %376 = vmatpush2.msra.mxu0 0.0
        %377 = vmatprep.subr.mxu0 0.0
        %378 = vmatpush2.msra.mxu0 0.0
        %379 = vmatprep.subr.mxu0 0.0
        %380 = vmatpush2.msra.mxu0 0.0
        %381 = vmatprep.subr.mxu0 0.0
        %382 = vmatpush2.msra.mxu0 0.0
        %383 = vmatprep.subr.mxu0 0.0
        %384 = vmatpush2.msra.mxu0 0.0
        %385 = vmatprep.subr.mxu0 0.0
        %386 = vmatpush2.msra.mxu0 0.0
        %387 = vmatprep.subr.mxu0 0.0
        %388 = vmatpush2.msra.mxu0 0.0
        %389 = vmatprep.subr.mxu0 0.0
        %390 = vmatpush2.msra.mxu0 0.0
        %391 = vmatprep.subr.mxu0 0.0
        %392 = vmatpush2.msra.mxu0 0.0
        %393 = vmatprep.subr.mxu0 0.0
        %394 = vmatpush2.msra.mxu0 0.0
        %395 = vmatprep.subr.mxu0 0.0
        %396 = vmatpush2.msra.mxu0 0.0
        %397 = vmatprep.subr.mxu0 0.0
        %398 = vmatpush2.msra.mxu0 0.0
        %399 = vmatprep.subr.mxu0 0.0
        %400 = vmatpush2.msra.mxu0 0.0
        %401 = vmatprep.subr.mxu0 0.0
        %402 = vmatpush2.msra.mxu0 0.0
        %403 = vmatprep.subr.mxu0 0.0
        %404 = vmatpush2.msra.mxu0 0.0
        %405 = vmatprep.subr.mxu0 0.0
        %406 = vmatpush2.msra.mxu0 0.0
        %407 = vmatprep.mubr.f32.mxu0 0.0
        %408 = vmatmul.mubr.f32.gmra.mxu0 %v236
        %v409 = vpop.f32.mrf.mxu0
        %v410 = vadd.f32 0.0, %v409
        %v411 = vpop.f32.mrf.mxu0
        %v412 = vadd.f32 0.0, %v411
        %413 = vmatprep.mubr.f32.mxu0 0.0
        %414 = vmatmul.mubr.f32.gmra.mxu0 %v239
        %v415 = vpop.f32.mrf.mxu0
        %v416 = vadd.f32 0.0, %v415
        %v417 = vpop.f32.mrf.mxu0
        %v418 = vadd.f32 0.0, %v417
        %419 = vdwg.mxu0
        %420 = vmatprep.subr.mxu0 0.0
        %421 = vmatpush1.msra.mxu0 0.0
        %422 = vmatprep.subr.mxu0 0.0
        %423 = vmatpush1.msra.mxu0 0.0
        %424 = vmatprep.subr.mxu0 0.0
        %425 = vmatpush1.msra.mxu0 0.0
        %426 = vmatprep.subr.mxu0 0.0
        %427 = vmatpush1.msra.mxu0 0.0
        %428 = vmatprep.subr.mxu0 0.0
        %429 = vmatpush1.msra.mxu0 0.0
        %430 = vmatprep.subr.mxu0 0.0
        %431 = vmatpush1.msra.mxu0 0.0
        %432 = vmatprep.subr.mxu0 0.0
        %433 = vmatpush1.msra.mxu0 0.0
        %434 = vmatprep.subr.mxu0 0.0
        %435 = vmatpush1.msra.mxu0 0.0
        %436 = vmatprep.subr.mxu0 0.0
        %437 = vmatpush1.msra.mxu0 0.0
        %438 = vmatprep.subr.mxu0 0.0
        %439 = vmatpush1.msra.mxu0 0.0
        %440 = vmatprep.subr.mxu0 0.0
        %441 = vmatpush1.msra.mxu0 0.0
        %442 = vmatprep.subr.mxu0 0.0
        %443 = vmatpush1.msra.mxu0 0.0
        %444 = vmatprep.subr.mxu0 %v258
        %445 = vmatpush1.msra.mxu0 %v255
        %446 = vmatprep.subr.mxu0 %v223
        %447 = vmatpush1.msra.mxu0 %v222
        %448 = vmatprep.subr.mxu0 %v215
        %449 = vmatpush1.msra.mxu0 %v214
        %450 = vmatprep.subr.mxu0 %v207
        %451 = vmatpush1.msra.mxu0 %v206
        %452 = vmatprep.subr.mxu0 0.0
        %453 = vmatpush2.msra.mxu0 0.0
        %454 = vmatprep.subr.mxu0 0.0
        %455 = vmatpush2.msra.mxu0 0.0
        %456 = vmatprep.subr.mxu0 0.0
        %457 = vmatpush2.msra.mxu0 0.0
        %458 = vmatprep.subr.mxu0 0.0
        %459 = vmatpush2.msra.mxu0 0.0
        %460 = vmatprep.subr.mxu0 0.0
        %461 = vmatpush2.msra.mxu0 0.0
        %462 = vmatprep.subr.mxu0 0.0
        %463 = vmatpush2.msra.mxu0 0.0
        %464 = vmatprep.subr.mxu0 0.0
        %465 = vmatpush2.msra.mxu0 0.0
        %466 = vmatprep.subr.mxu0 0.0
        %467 = vmatpush2.msra.mxu0 0.0
        %468 = vmatprep.subr.mxu0 0.0
        %469 = vmatpush2.msra.mxu0 0.0
        %470 = vmatprep.subr.mxu0 0.0
        %471 = vmatpush2.msra.mxu0 0.0
        %472 = vmatprep.subr.mxu0 0.0
        %473 = vmatpush2.msra.mxu0 0.0
        %474 = vmatprep.subr.mxu0 0.0
        %475 = vmatpush2.msra.mxu0 0.0
        %476 = vmatprep.subr.mxu0 0.0
        %477 = vmatpush2.msra.mxu0 0.0
        %478 = vmatprep.subr.mxu0 0.0
        %479 = vmatpush2.msra.mxu0 0.0
        %480 = vmatprep.subr.mxu0 0.0
        %481 = vmatpush2.msra.mxu0 0.0
        %482 = vmatprep.subr.mxu0 0.0
        %483 = vmatpush2.msra.mxu0 0.0
        %484 = vmatprep.mubr.f32.mxu0 0.0
        %485 = vmatmul.mubr.f32.gmra.mxu0 %v236
        %v486 = vpop.f32.mrf.mxu0
        %v487 = vadd.f32 0.0, %v486
        %v488 = vpop.f32.mrf.mxu0
        %v489 = vadd.f32 0.0, %v488
        %490 = vmatprep.mubr.f32.mxu0 0.0
        %491 = vmatmul.mubr.f32.gmra.mxu0 %v239
        %v492 = vpop.f32.mrf.mxu0
        %v493 = vadd.f32 0.0, %v492
        %v494 = vpop.f32.mrf.mxu0
        %v495 = vadd.f32 0.0, %v494
        %496 = vdwg.mxu0
        %497 = vmatprep.subr.mxu0 0.0
        %498 = vmatpush1.msra.mxu0 0.0
        %499 = vmatprep.subr.mxu0 0.0
        %500 = vmatpush1.msra.mxu0 0.0
        %501 = vmatprep.subr.mxu0 0.0
        %502 = vmatpush1.msra.mxu0 0.0
        %503 = vmatprep.subr.mxu0 0.0
        %504 = vmatpush1.msra.mxu0 0.0
        %505 = vmatprep.subr.mxu0 0.0
        %506 = vmatpush1.msra.mxu0 0.0
        %507 = vmatprep.subr.mxu0 0.0
        %508 = vmatpush1.msra.mxu0 0.0
        %509 = vmatprep.subr.mxu0 0.0
        %510 = vmatpush1.msra.mxu0 0.0
        %511 = vmatprep.subr.mxu0 0.0
        %512 = vmatpush1.msra.mxu0 0.0
        %513 = vmatprep.subr.mxu0 0.0
        %514 = vmatpush1.msra.mxu0 0.0
        %515 = vmatprep.subr.mxu0 0.0
        %516 = vmatpush1.msra.mxu0 0.0
        %517 = vmatprep.subr.mxu0 0.0
        %518 = vmatpush1.msra.mxu0 0.0
        %519 = vmatprep.subr.mxu0 0.0
        %520 = vmatpush1.msra.mxu0 0.0
        %521 = vmatprep.subr.mxu0 %v264
        %522 = vmatpush1.msra.mxu0 %v261
        %523 = vmatprep.subr.mxu0 %v225
        %524 = vmatpush1.msra.mxu0 %v224
        %525 = vmatprep.subr.mxu0 %v217
        %526 = vmatpush1.msra.mxu0 %v216
        %527 = vmatprep.subr.mxu0 %v209
        %528 = vmatpush1.msra.mxu0 %v208
        %529 = vmatprep.subr.mxu0 0.0
        %530 = vmatpush2.msra.mxu0 0.0
        %531 = vmatprep.subr.mxu0 0.0
        %532 = vmatpush2.msra.mxu0 0.0
        %533 = vmatprep.subr.mxu0 0.0
        %534 = vmatpush2.msra.mxu0 0.0
        %535 = vmatprep.subr.mxu0 0.0
        %536 = vmatpush2.msra.mxu0 0.0
        %537 = vmatprep.subr.mxu0 0.0
        %538 = vmatpush2.msra.mxu0 0.0
        %539 = vmatprep.subr.mxu0 0.0
        %540 = vmatpush2.msra.mxu0 0.0
        %541 = vmatprep.subr.mxu0 0.0
        %542 = vmatpush2.msra.mxu0 0.0
        %543 = vmatprep.subr.mxu0 0.0
        %544 = vmatpush2.msra.mxu0 0.0
        %545 = vmatprep.subr.mxu0 0.0
        %546 = vmatpush2.msra.mxu0 0.0
        %547 = vmatprep.subr.mxu0 0.0
        %548 = vmatpush2.msra.mxu0 0.0
        %549 = vmatprep.subr.mxu0 0.0
        %550 = vmatpush2.msra.mxu0 0.0
        %551 = vmatprep.subr.mxu0 0.0
        %552 = vmatpush2.msra.mxu0 0.0
        %553 = vmatprep.subr.mxu0 0.0
        %554 = vmatpush2.msra.mxu0 0.0
        %555 = vmatprep.subr.mxu0 0.0
        %556 = vmatpush2.msra.mxu0 0.0
        %557 = vmatprep.subr.mxu0 0.0
        %558 = vmatpush2.msra.mxu0 0.0
        %559 = vmatprep.subr.mxu0 0.0
        %560 = vmatpush2.msra.mxu0 0.0
        %561 = vmatprep.mubr.f32.mxu0 0.0
        %562 = vmatmul.mubr.f32.gmra.mxu0 %v236
        %v563 = vpop.f32.mrf.mxu0
        %v564 = vadd.f32 0.0, %v563
        %v565 = vpop.f32.mrf.mxu0
        %v566 = vadd.f32 0.0, %v565
        %567 = vmatprep.mubr.f32.mxu0 0.0
        %568 = vmatmul.mubr.f32.gmra.mxu0 %v239
        %v569 = vpop.f32.mrf.mxu0
        %v570 = vadd.f32 0.0, %v569
        %v571 = vpop.f32.mrf.mxu0
        %v572 = vadd.f32 0.0, %v571
        %573 = vdwg.mxu0
        %s574 = scalar_lea.vmem %s197, 256
        %v575 = vld [vmem:[%s574] sm:$0xff]
        %v576 = vld [vmem:[%s574 + $0x8] sm:$0xff]
        %v577 = vld [vmem:[%s574 + $0x10] sm:$0xff]
        %v578 = vld [vmem:[%s574 + $0x18] sm:$0xff]
        %v579 = vld [vmem:[%s574 + $0x20] sm:$0xff]
        %v580 = vld [vmem:[%s574 + $0x28] sm:$0xff]
        %v581 = vld [vmem:[%s574 + $0x30] sm:$0xff]
        %v582 = vld [vmem:[%s574 + $0x38] sm:$0xff]
        %v583 = vld [vmem:[%s574 + $0x40] sm:$0xff]
        %v584 = vld [vmem:[%s574 + $0x48] sm:$0xff]
        %v585 = vld [vmem:[%s574 + $0x50] sm:$0xff]
        %v586 = vld [vmem:[%s574 + $0x58] sm:$0xff]
        %v587 = vld [vmem:[%s574 + $0x60] sm:$0xff]
        %v588 = vld [vmem:[%s574 + $0x68] sm:$0xff]
        %v589 = vld [vmem:[%s574 + $0x70] sm:$0xff]
        %v590 = vld [vmem:[%s574 + $0x78] sm:$0xff]
        %v591 = vld [vmem:[%s574 + $0x80] sm:$0xff]
        %v592 = vld [vmem:[%s574 + $0x88] sm:$0xff]
        %v593 = vld [vmem:[%s574 + $0x90] sm:$0xff]
        %v594 = vld [vmem:[%s574 + $0x98] sm:$0xff]
        %v595 = vld [vmem:[%s574 + $0xa0] sm:$0xff]
        %v596 = vld [vmem:[%s574 + $0xa8] sm:$0xff]
        %v597 = vld [vmem:[%s574 + $0xb0] sm:$0xff]
        %v598 = vld [vmem:[%s574 + $0xb8] sm:$0xff]
        %v599 = vld [vmem:[%s574 + $0xc0] sm:$0x7]
        %v600 = vld [vmem:[%s574 + $0xc8] sm:$0x7]
        %v601 = vld [vmem:[%s574 + $0xd0] sm:$0x7]
        %v602 = vld [vmem:[%s574 + $0xd8] sm:$0x7]
        %v603 = vld [vmem:[%s574 + $0xe0] sm:$0x7]
        %v604 = vld [vmem:[%s574 + $0xe8] sm:$0x7]
        %v605 = vld [vmem:[%s574 + $0xf0] sm:$0x7]
        %v606 = vld [vmem:[%s574 + $0xf8] sm:$0x7]
        %v608 = vsel %vm241, %v599, 0
        %v611 = vsel %vm241, %v600, 0
        %v614 = vsel %vm241, %v601, 0
        %v617 = vsel %vm241, %v602, 0
        %v620 = vsel %vm241, %v603, 0
        %v623 = vsel %vm241, %v604, 0
        %v626 = vsel %vm241, %v605, 0
        %v629 = vsel %vm241, %v606, 0
        %631 = vmatprep.subr.mxu0 0.0
        %632 = vmatpush1.msra.mxu0 0.0
        %633 = vmatprep.subr.mxu0 0.0
        %634 = vmatpush1.msra.mxu0 0.0
        %635 = vmatprep.subr.mxu0 0.0
        %636 = vmatpush1.msra.mxu0 0.0
        %637 = vmatprep.subr.mxu0 0.0
        %638 = vmatpush1.msra.mxu0 0.0
        %639 = vmatprep.subr.mxu0 0.0
        %640 = vmatpush1.msra.mxu0 0.0
        %641 = vmatprep.subr.mxu0 0.0
        %642 = vmatpush1.msra.mxu0 0.0
        %643 = vmatprep.subr.mxu0 0.0
        %644 = vmatpush1.msra.mxu0 0.0
        %645 = vmatprep.subr.mxu0 0.0
        %646 = vmatpush1.msra.mxu0 0.0
        %647 = vmatprep.subr.mxu0 0.0
        %648 = vmatpush1.msra.mxu0 0.0
        %649 = vmatprep.subr.mxu0 0.0
        %650 = vmatpush1.msra.mxu0 0.0
        %651 = vmatprep.subr.mxu0 0.0
        %652 = vmatpush1.msra.mxu0 0.0
        %653 = vmatprep.subr.mxu0 0.0
        %654 = vmatpush1.msra.mxu0 0.0
        %655 = vmatprep.subr.mxu0 %v611
        %656 = vmatpush1.msra.mxu0 %v608
        %657 = vmatprep.subr.mxu0 %v592
        %658 = vmatpush1.msra.mxu0 %v591
        %659 = vmatprep.subr.mxu0 %v584
        %660 = vmatpush1.msra.mxu0 %v583
        %661 = vmatprep.subr.mxu0 %v576
        %662 = vmatpush1.msra.mxu0 %v575
        %663 = vmatprep.subr.mxu0 0.0
        %664 = vmatpush2.msra.mxu0 0.0
        %665 = vmatprep.subr.mxu0 0.0
        %666 = vmatpush2.msra.mxu0 0.0
        %667 = vmatprep.subr.mxu0 0.0
        %668 = vmatpush2.msra.mxu0 0.0
        %669 = vmatprep.subr.mxu0 0.0
        %670 = vmatpush2.msra.mxu0 0.0
        %671 = vmatprep.subr.mxu0 0.0
        %672 = vmatpush2.msra.mxu0 0.0
        %673 = vmatprep.subr.mxu0 0.0
        %674 = vmatpush2.msra.mxu0 0.0
        %675 = vmatprep.subr.mxu0 0.0
        %676 = vmatpush2.msra.mxu0 0.0
        %677 = vmatprep.subr.mxu0 0.0
        %678 = vmatpush2.msra.mxu0 0.0
        %679 = vmatprep.subr.mxu0 0.0
        %680 = vmatpush2.msra.mxu0 0.0
        %681 = vmatprep.subr.mxu0 0.0
        %682 = vmatpush2.msra.mxu0 0.0
        %683 = vmatprep.subr.mxu0 0.0
        %684 = vmatpush2.msra.mxu0 0.0
        %685 = vmatprep.subr.mxu0 0.0
        %686 = vmatpush2.msra.mxu0 0.0
        %687 = vmatprep.subr.mxu0 0.0
        %688 = vmatpush2.msra.mxu0 0.0
        %689 = vmatprep.subr.mxu0 0.0
        %690 = vmatpush2.msra.mxu0 0.0
        %691 = vmatprep.subr.mxu0 0.0
        %692 = vmatpush2.msra.mxu0 0.0
        %693 = vmatprep.subr.mxu0 0.0
        %694 = vmatpush2.msra.mxu0 0.0
        %695 = vmatprep.mubr.f32.mxu0 0.0
        %696 = vmatmul.mubr.f32.gmra.mxu0 %v236
        %v697 = vpop.f32.mrf.mxu0
        %v698 = vadd.f32 0.0, %v697
        %v699 = vpop.f32.mrf.mxu0
        %v700 = vadd.f32 0.0, %v699
        %701 = vmatprep.mubr.f32.mxu0 0.0
        %702 = vmatmul.mubr.f32.gmra.mxu0 %v239
        %v703 = vpop.f32.mrf.mxu0
        %v704 = vadd.f32 0.0, %v703
        %v705 = vpop.f32.mrf.mxu0
        %v706 = vadd.f32 0.0, %v705
        %707 = vdwg.mxu0
        %708 = vmatprep.subr.mxu0 0.0
        %709 = vmatpush1.msra.mxu0 0.0
        %710 = vmatprep.subr.mxu0 0.0
        %711 = vmatpush1.msra.mxu0 0.0
        %712 = vmatprep.subr.mxu0 0.0
        %713 = vmatpush1.msra.mxu0 0.0
        %714 = vmatprep.subr.mxu0 0.0
        %715 = vmatpush1.msra.mxu0 0.0
        %716 = vmatprep.subr.mxu0 0.0
        %717 = vmatpush1.msra.mxu0 0.0
        %718 = vmatprep.subr.mxu0 0.0
        %719 = vmatpush1.msra.mxu0 0.0
        %720 = vmatprep.subr.mxu0 0.0
        %721 = vmatpush1.msra.mxu0 0.0
        %722 = vmatprep.subr.mxu0 0.0
        %723 = vmatpush1.msra.mxu0 0.0
        %724 = vmatprep.subr.mxu0 0.0
        %725 = vmatpush1.msra.mxu0 0.0
        %726 = vmatprep.subr.mxu0 0.0
        %727 = vmatpush1.msra.mxu0 0.0
        %728 = vmatprep.subr.mxu0 0.0
        %729 = vmatpush1.msra.mxu0 0.0
        %730 = vmatprep.subr.mxu0 0.0
        %731 = vmatpush1.msra.mxu0 0.0
        %732 = vmatprep.subr.mxu0 %v617
        %733 = vmatpush1.msra.mxu0 %v614
        %734 = vmatprep.subr.mxu0 %v594
        %735 = vmatpush1.msra.mxu0 %v593
        %736 = vmatprep.subr.mxu0 %v586
        %737 = vmatpush1.msra.mxu0 %v585
        %738 = vmatprep.subr.mxu0 %v578
        %739 = vmatpush1.msra.mxu0 %v577
        %740 = vmatprep.subr.mxu0 0.0
        %741 = vmatpush2.msra.mxu0 0.0
        %742 = vmatprep.subr.mxu0 0.0
        %743 = vmatpush2.msra.mxu0 0.0
        %744 = vmatprep.subr.mxu0 0.0
        %745 = vmatpush2.msra.mxu0 0.0
        %746 = vmatprep.subr.mxu0 0.0
        %747 = vmatpush2.msra.mxu0 0.0
        %748 = vmatprep.subr.mxu0 0.0
        %749 = vmatpush2.msra.mxu0 0.0
        %750 = vmatprep.subr.mxu0 0.0
        %751 = vmatpush2.msra.mxu0 0.0
        %752 = vmatprep.subr.mxu0 0.0
        %753 = vmatpush2.msra.mxu0 0.0
        %754 = vmatprep.subr.mxu0 0.0
        %755 = vmatpush2.msra.mxu0 0.0
        %756 = vmatprep.subr.mxu0 0.0
        %757 = vmatpush2.msra.mxu0 0.0
        %758 = vmatprep.subr.mxu0 0.0
        %759 = vmatpush2.msra.mxu0 0.0
        %760 = vmatprep.subr.mxu0 0.0
        %761 = vmatpush2.msra.mxu0 0.0
        %762 = vmatprep.subr.mxu0 0.0
        %763 = vmatpush2.msra.mxu0 0.0
        %764 = vmatprep.subr.mxu0 0.0
        %765 = vmatpush2.msra.mxu0 0.0
        %766 = vmatprep.subr.mxu0 0.0
        %767 = vmatpush2.msra.mxu0 0.0
        %768 = vmatprep.subr.mxu0 0.0
        %769 = vmatpush2.msra.mxu0 0.0
        %770 = vmatprep.subr.mxu0 0.0
        %771 = vmatpush2.msra.mxu0 0.0
        %772 = vmatprep.mubr.f32.mxu0 0.0
        %773 = vmatmul.mubr.f32.gmra.mxu0 %v236
        %v774 = vpop.f32.mrf.mxu0
        %v775 = vadd.f32 0.0, %v774
        %v776 = vpop.f32.mrf.mxu0
        %v777 = vadd.f32 0.0, %v776
        %778 = vmatprep.mubr.f32.mxu0 0.0
        %779 = vmatmul.mubr.f32.gmra.mxu0 %v239
        %v780 = vpop.f32.mrf.mxu0
        %v781 = vadd.f32 0.0, %v780
        %v782 = vpop.f32.mrf.mxu0
        %v783 = vadd.f32 0.0, %v782
        %784 = vdwg.mxu0
        %785 = vmatprep.subr.mxu0 0.0
        %786 = vmatpush1.msra.mxu0 0.0
        %787 = vmatprep.subr.mxu0 0.0
        %788 = vmatpush1.msra.mxu0 0.0
        %789 = vmatprep.subr.mxu0 0.0
        %790 = vmatpush1.msra.mxu0 0.0
        %791 = vmatprep.subr.mxu0 0.0
        %792 = vmatpush1.msra.mxu0 0.0
        %793 = vmatprep.subr.mxu0 0.0
        %794 = vmatpush1.msra.mxu0 0.0
        %795 = vmatprep.subr.mxu0 0.0
        %796 = vmatpush1.msra.mxu0 0.0
        %797 = vmatprep.subr.mxu0 0.0
        %798 = vmatpush1.msra.mxu0 0.0
        %799 = vmatprep.subr.mxu0 0.0
        %800 = vmatpush1.msra.mxu0 0.0
        %801 = vmatprep.subr.mxu0 0.0
        %802 = vmatpush1.msra.mxu0 0.0
        %803 = vmatprep.subr.mxu0 0.0
        %804 = vmatpush1.msra.mxu0 0.0
        %805 = vmatprep.subr.mxu0 0.0
        %806 = vmatpush1.msra.mxu0 0.0
        %807 = vmatprep.subr.mxu0 0.0
        %808 = vmatpush1.msra.mxu0 0.0
        %809 = vmatprep.subr.mxu0 %v623
        %810 = vmatpush1.msra.mxu0 %v620
        %811 = vmatprep.subr.mxu0 %v596
        %812 = vmatpush1.msra.mxu0 %v595
        %813 = vmatprep.subr.mxu0 %v588
        %814 = vmatpush1.msra.mxu0 %v587
        %815 = vmatprep.subr.mxu0 %v580
        %816 = vmatpush1.msra.mxu0 %v579
        %817 = vmatprep.subr.mxu0 0.0
        %818 = vmatpush2.msra.mxu0 0.0
        %819 = vmatprep.subr.mxu0 0.0
        %820 = vmatpush2.msra.mxu0 0.0
        %821 = vmatprep.subr.mxu0 0.0
        %822 = vmatpush2.msra.mxu0 0.0
        %823 = vmatprep.subr.mxu0 0.0
        %824 = vmatpush2.msra.mxu0 0.0
        %825 = vmatprep.subr.mxu0 0.0
        %826 = vmatpush2.msra.mxu0 0.0
        %827 = vmatprep.subr.mxu0 0.0
        %828 = vmatpush2.msra.mxu0 0.0
        %829 = vmatprep.subr.mxu0 0.0
        %830 = vmatpush2.msra.mxu0 0.0
        %831 = vmatprep.subr.mxu0 0.0
        %832 = vmatpush2.msra.mxu0 0.0
        %833 = vmatprep.subr.mxu0 0.0
        %834 = vmatpush2.msra.mxu0 0.0
        %835 = vmatprep.subr.mxu0 0.0
        %836 = vmatpush2.msra.mxu0 0.0
        %837 = vmatprep.subr.mxu0 0.0
        %838 = vmatpush2.msra.mxu0 0.0
        %839 = vmatprep.subr.mxu0 0.0
        %840 = vmatpush2.msra.mxu0 0.0
        %841 = vmatprep.subr.mxu0 0.0
        %842 = vmatpush2.msra.mxu0 0.0
        %843 = vmatprep.subr.mxu0 0.0
        %844 = vmatpush2.msra.mxu0 0.0
        %845 = vmatprep.subr.mxu0 0.0
        %846 = vmatpush2.msra.mxu0 0.0
        %847 = vmatprep.subr.mxu0 0.0
        %848 = vmatpush2.msra.mxu0 0.0
        %849 = vmatprep.mubr.f32.mxu0 0.0
        %850 = vmatmul.mubr.f32.gmra.mxu0 %v236
        %v851 = vpop.f32.mrf.mxu0
        %v852 = vadd.f32 0.0, %v851
        %v853 = vpop.f32.mrf.mxu0
        %v854 = vadd.f32 0.0, %v853
        %855 = vmatprep.mubr.f32.mxu0 0.0
        %856 = vmatmul.mubr.f32.gmra.mxu0 %v239
        %v857 = vpop.f32.mrf.mxu0
        %v858 = vadd.f32 0.0, %v857
        %v859 = vpop.f32.mrf.mxu0
        %v860 = vadd.f32 0.0, %v859
        %861 = vdwg.mxu0
        %862 = vmatprep.subr.mxu0 0.0
        %863 = vmatpush1.msra.mxu0 0.0
        %864 = vmatprep.subr.mxu0 0.0
        %865 = vmatpush1.msra.mxu0 0.0
        %866 = vmatprep.subr.mxu0 0.0
        %867 = vmatpush1.msra.mxu0 0.0
        %868 = vmatprep.subr.mxu0 0.0
        %869 = vmatpush1.msra.mxu0 0.0
        %870 = vmatprep.subr.mxu0 0.0
        %871 = vmatpush1.msra.mxu0 0.0
        %872 = vmatprep.subr.mxu0 0.0
        %873 = vmatpush1.msra.mxu0 0.0
        %874 = vmatprep.subr.mxu0 0.0
        %875 = vmatpush1.msra.mxu0 0.0
        %876 = vmatprep.subr.mxu0 0.0
        %877 = vmatpush1.msra.mxu0 0.0
        %878 = vmatprep.subr.mxu0 0.0
        %879 = vmatpush1.msra.mxu0 0.0
        %880 = vmatprep.subr.mxu0 0.0
        %881 = vmatpush1.msra.mxu0 0.0
        %882 = vmatprep.subr.mxu0 0.0
        %883 = vmatpush1.msra.mxu0 0.0
        %884 = vmatprep.subr.mxu0 0.0
        %885 = vmatpush1.msra.mxu0 0.0
        %886 = vmatprep.subr.mxu0 %v629
        %887 = vmatpush1.msra.mxu0 %v626
        %888 = vmatprep.subr.mxu0 %v598
        %889 = vmatpush1.msra.mxu0 %v597
        %890 = vmatprep.subr.mxu0 %v590
        %891 = vmatpush1.msra.mxu0 %v589
        %892 = vmatprep.subr.mxu0 %v582
        %893 = vmatpush1.msra.mxu0 %v581
        %894 = vmatprep.subr.mxu0 0.0
        %895 = vmatpush2.msra.mxu0 0.0
        %896 = vmatprep.subr.mxu0 0.0
        %897 = vmatpush2.msra.mxu0 0.0
        %898 = vmatprep.subr.mxu0 0.0
        %899 = vmatpush2.msra.mxu0 0.0
        %900 = vmatprep.subr.mxu0 0.0
        %901 = vmatpush2.msra.mxu0 0.0
        %902 = vmatprep.subr.mxu0 0.0
        %903 = vmatpush2.msra.mxu0 0.0
        %904 = vmatprep.subr.mxu0 0.0
        %905 = vmatpush2.msra.mxu0 0.0
        %906 = vmatprep.subr.mxu0 0.0
        %907 = vmatpush2.msra.mxu0 0.0
        %908 = vmatprep.subr.mxu0 0.0
        %909 = vmatpush2.msra.mxu0 0.0
        %910 = vmatprep.subr.mxu0 0.0
        %911 = vmatpush2.msra.mxu0 0.0
        %912 = vmatprep.subr.mxu0 0.0
        %913 = vmatpush2.msra.mxu0 0.0
        %914 = vmatprep.subr.mxu0 0.0
        %915 = vmatpush2.msra.mxu0 0.0
        %916 = vmatprep.subr.mxu0 0.0
        %917 = vmatpush2.msra.mxu0 0.0
        %918 = vmatprep.subr.mxu0 0.0
        %919 = vmatpush2.msra.mxu0 0.0
        %920 = vmatprep.subr.mxu0 0.0
        %921 = vmatpush2.msra.mxu0 0.0
        %922 = vmatprep.subr.mxu0 0.0
        %923 = vmatpush2.msra.mxu0 0.0
        %924 = vmatprep.subr.mxu0 0.0
        %925 = vmatpush2.msra.mxu0 0.0
        %926 = vmatprep.mubr.f32.mxu0 0.0
        %927 = vmatmul.mubr.f32.gmra.mxu0 %v236
        %v928 = vpop.f32.mrf.mxu0
        %v929 = vadd.f32 0.0, %v928
        %v930 = vpop.f32.mrf.mxu0
        %v931 = vadd.f32 0.0, %v930
        %932 = vmatprep.mubr.f32.mxu0 0.0
        %933 = vmatmul.mubr.f32.gmra.mxu0 %v239
        %v934 = vpop.f32.mrf.mxu0
        %v935 = vadd.f32 0.0, %v934
        %v936 = vpop.f32.mrf.mxu0
        %v937 = vadd.f32 0.0, %v936
        %938 = vdwg.mxu0
        %v939 = vmax.f32 %v333, %v698
        %v940 = vmax.f32 %v335, %v700
        %v941 = vmax.f32 %v410, %v775
        %v942 = vmax.f32 %v412, %v777
        %v943 = vmax.f32 %v487, %v852
        %v944 = vmax.f32 %v489, %v854
        %v945 = vmax.f32 %v564, %v929
        %v946 = vmax.f32 %v566, %v931
        %v947 = vmax.f32 %v339, %v704
        %v948 = vmax.f32 %v341, %v706
        %v949 = vmax.f32 %v416, %v781
        %v950 = vmax.f32 %v418, %v783
        %v951 = vmax.f32 %v493, %v858
        %v952 = vmax.f32 %v495, %v860
        %v953 = vmax.f32 %v570, %v935
        %v954 = vmax.f32 %v572, %v937
        %s955 = scalar_lea.vmem %s197, 512
        %v956 = vld [vmem:[%s955] sm:$0xff]
        %v957 = vld [vmem:[%s955 + $0x8] sm:$0xff]
        %v958 = vld [vmem:[%s955 + $0x10] sm:$0xff]
        %v959 = vld [vmem:[%s955 + $0x18] sm:$0xff]
        %v960 = vld [vmem:[%s955 + $0x20] sm:$0xff]
        %v961 = vld [vmem:[%s955 + $0x28] sm:$0xff]
        %v962 = vld [vmem:[%s955 + $0x30] sm:$0xff]
        %v963 = vld [vmem:[%s955 + $0x38] sm:$0xff]
        %v964 = vld [vmem:[%s955 + $0x40] sm:$0xff]
        %v965 = vld [vmem:[%s955 + $0x48] sm:$0xff]
        %v966 = vld [vmem:[%s955 + $0x50] sm:$0xff]
        %v967 = vld [vmem:[%s955 + $0x58] sm:$0xff]
        %v968 = vld [vmem:[%s955 + $0x60] sm:$0xff]
        %v969 = vld [vmem:[%s955 + $0x68] sm:$0xff]
        %v970 = vld [vmem:[%s955 + $0x70] sm:$0xff]
        %v971 = vld [vmem:[%s955 + $0x78] sm:$0xff]
        %v972 = vld [vmem:[%s955 + $0x80] sm:$0xff]
        %v973 = vld [vmem:[%s955 + $0x88] sm:$0xff]
        %v974 = vld [vmem:[%s955 + $0x90] sm:$0xff]
        %v975 = vld [vmem:[%s955 + $0x98] sm:$0xff]
        %v976 = vld [vmem:[%s955 + $0xa0] sm:$0xff]
        %v977 = vld [vmem:[%s955 + $0xa8] sm:$0xff]
        %v978 = vld [vmem:[%s955 + $0xb0] sm:$0xff]
        %v979 = vld [vmem:[%s955 + $0xb8] sm:$0xff]
        %v980 = vld [vmem:[%s955 + $0xc0] sm:$0x7]
        %v981 = vld [vmem:[%s955 + $0xc8] sm:$0x7]
        %v982 = vld [vmem:[%s955 + $0xd0] sm:$0x7]
        %v983 = vld [vmem:[%s955 + $0xd8] sm:$0x7]
        %v984 = vld [vmem:[%s955 + $0xe0] sm:$0x7]
        %v985 = vld [vmem:[%s955 + $0xe8] sm:$0x7]
        %v986 = vld [vmem:[%s955 + $0xf0] sm:$0x7]
        %v987 = vld [vmem:[%s955 + $0xf8] sm:$0x7]
        %v989 = vsel %vm241, %v980, 0
        %v992 = vsel %vm241, %v981, 0
        %v995 = vsel %vm241, %v982, 0
        %v998 = vsel %vm241, %v983, 0
        %v1001 = vsel %vm241, %v984, 0
        %v1004 = vsel %vm241, %v985, 0
        %v1007 = vsel %vm241, %v986, 0
        %v1010 = vsel %vm241, %v987, 0
        %1012 = vmatprep.subr.mxu0 0.0
        %1013 = vmatpush1.msra.mxu0 0.0
        %1014 = vmatprep.subr.mxu0 0.0
        %1015 = vmatpush1.msra.mxu0 0.0
        %1016 = vmatprep.subr.mxu0 0.0
        %1017 = vmatpush1.msra.mxu0 0.0
        %1018 = vmatprep.subr.mxu0 0.0
        %1019 = vmatpush1.msra.mxu0 0.0
        %1020 = vmatprep.subr.mxu0 0.0
        %1021 = vmatpush1.msra.mxu0 0.0
        %1022 = vmatprep.subr.mxu0 0.0
        %1023 = vmatpush1.msra.mxu0 0.0
        %1024 = vmatprep.subr.mxu0 0.0
        %1025 = vmatpush1.msra.mxu0 0.0
        %1026 = vmatprep.subr.mxu0 0.0
        %1027 = vmatpush1.msra.mxu0 0.0
        %1028 = vmatprep.subr.mxu0 0.0
        %1029 = vmatpush1.msra.mxu0 0.0
        %1030 = vmatprep.subr.mxu0 0.0
        %1031 = vmatpush1.msra.mxu0 0.0
        %1032 = vmatprep.subr.mxu0 0.0
        %1033 = vmatpush1.msra.mxu0 0.0
        %1034 = vmatprep.subr.mxu0 0.0
        %1035 = vmatpush1.msra.mxu0 0.0
        %1036 = vmatprep.subr.mxu0 %v992
        %1037 = vmatpush1.msra.mxu0 %v989
        %1038 = vmatprep.subr.mxu0 %v973
        %1039 = vmatpush1.msra.mxu0 %v972
        %1040 = vmatprep.subr.mxu0 %v965
        %1041 = vmatpush1.msra.mxu0 %v964
        %1042 = vmatprep.subr.mxu0 %v957
        %1043 = vmatpush1.msra.mxu0 %v956
        %1044 = vmatprep.subr.mxu0 0.0
        %1045 = vmatpush2.msra.mxu0 0.0
        %1046 = vmatprep.subr.mxu0 0.0
        %1047 = vmatpush2.msra.mxu0 0.0
        %1048 = vmatprep.subr.mxu0 0.0
        %1049 = vmatpush2.msra.mxu0 0.0
        %1050 = vmatprep.subr.mxu0 0.0
        %1051 = vmatpush2.msra.mxu0 0.0
        %1052 = vmatprep.subr.mxu0 0.0
        %1053 = vmatpush2.msra.mxu0 0.0
        %1054 = vmatprep.subr.mxu0 0.0
        %1055 = vmatpush2.msra.mxu0 0.0
        %1056 = vmatprep.subr.mxu0 0.0
        %1057 = vmatpush2.msra.mxu0 0.0
        %1058 = vmatprep.subr.mxu0 0.0
        %1059 = vmatpush2.msra.mxu0 0.0
        %1060 = vmatprep.subr.mxu0 0.0
        %1061 = vmatpush2.msra.mxu0 0.0
        %1062 = vmatprep.subr.mxu0 0.0
        %1063 = vmatpush2.msra.mxu0 0.0
        %1064 = vmatprep.subr.mxu0 0.0
        %1065 = vmatpush2.msra.mxu0 0.0
        %1066 = vmatprep.subr.mxu0 0.0
        %1067 = vmatpush2.msra.mxu0 0.0
        %1068 = vmatprep.subr.mxu0 0.0
        %1069 = vmatpush2.msra.mxu0 0.0
        %1070 = vmatprep.subr.mxu0 0.0
        %1071 = vmatpush2.msra.mxu0 0.0
        %1072 = vmatprep.subr.mxu0 0.0
        %1073 = vmatpush2.msra.mxu0 0.0
        %1074 = vmatprep.subr.mxu0 0.0
        %1075 = vmatpush2.msra.mxu0 0.0
        %1076 = vmatprep.mubr.f32.mxu0 0.0
        %1077 = vmatmul.mubr.f32.gmra.mxu0 %v236
        %v1078 = vpop.f32.mrf.mxu0
        %v1079 = vadd.f32 0.0, %v1078
        %v1080 = vpop.f32.mrf.mxu0
        %v1081 = vadd.f32 0.0, %v1080
        %1082 = vmatprep.mubr.f32.mxu0 0.0
        %1083 = vmatmul.mubr.f32.gmra.mxu0 %v239
        %v1084 = vpop.f32.mrf.mxu0
        %v1085 = vadd.f32 0.0, %v1084
        %v1086 = vpop.f32.mrf.mxu0
        %v1087 = vadd.f32 0.0, %v1086
        %1088 = vdwg.mxu0
        %1089 = vmatprep.subr.mxu0 0.0
        %1090 = vmatpush1.msra.mxu0 0.0
        %1091 = vmatprep.subr.mxu0 0.0
        %1092 = vmatpush1.msra.mxu0 0.0
        %1093 = vmatprep.subr.mxu0 0.0
        %1094 = vmatpush1.msra.mxu0 0.0
        %1095 = vmatprep.subr.mxu0 0.0
        %1096 = vmatpush1.msra.mxu0 0.0
        %1097 = vmatprep.subr.mxu0 0.0
        %1098 = vmatpush1.msra.mxu0 0.0
        %1099 = vmatprep.subr.mxu0 0.0
        %1100 = vmatpush1.msra.mxu0 0.0
        %1101 = vmatprep.subr.mxu0 0.0
        %1102 = vmatpush1.msra.mxu0 0.0
        %1103 = vmatprep.subr.mxu0 0.0
        %1104 = vmatpush1.msra.mxu0 0.0
        %1105 = vmatprep.subr.mxu0 0.0
        %1106 = vmatpush1.msra.mxu0 0.0
        %1107 = vmatprep.subr.mxu0 0.0
        %1108 = vmatpush1.msra.mxu0 0.0
        %1109 = vmatprep.subr.mxu0 0.0
        %1110 = vmatpush1.msra.mxu0 0.0
        %1111 = vmatprep.subr.mxu0 0.0
        %1112 = vmatpush1.msra.mxu0 0.0
        %1113 = vmatprep.subr.mxu0 %v998
        %1114 = vmatpush1.msra.mxu0 %v995
        %1115 = vmatprep.subr.mxu0 %v975
        %1116 = vmatpush1.msra.mxu0 %v974
        %1117 = vmatprep.subr.mxu0 %v967
        %1118 = vmatpush1.msra.mxu0 %v966
        %1119 = vmatprep.subr.mxu0 %v959
        %1120 = vmatpush1.msra.mxu0 %v958
        %1121 = vmatprep.subr.mxu0 0.0
        %1122 = vmatpush2.msra.mxu0 0.0
        %1123 = vmatprep.subr.mxu0 0.0
        %1124 = vmatpush2.msra.mxu0 0.0
        %1125 = vmatprep.subr.mxu0 0.0
        %1126 = vmatpush2.msra.mxu0 0.0
        %1127 = vmatprep.subr.mxu0 0.0
        %1128 = vmatpush2.msra.mxu0 0.0
        %1129 = vmatprep.subr.mxu0 0.0
        %1130 = vmatpush2.msra.mxu0 0.0
        %1131 = vmatprep.subr.mxu0 0.0
        %1132 = vmatpush2.msra.mxu0 0.0
        %1133 = vmatprep.subr.mxu0 0.0
        %1134 = vmatpush2.msra.mxu0 0.0
        %1135 = vmatprep.subr.mxu0 0.0
        %1136 = vmatpush2.msra.mxu0 0.0
        %1137 = vmatprep.subr.mxu0 0.0
        %1138 = vmatpush2.msra.mxu0 0.0
        %1139 = vmatprep.subr.mxu0 0.0
        %1140 = vmatpush2.msra.mxu0 0.0
        %1141 = vmatprep.subr.mxu0 0.0
        %1142 = vmatpush2.msra.mxu0 0.0
        %1143 = vmatprep.subr.mxu0 0.0
        %1144 = vmatpush2.msra.mxu0 0.0
        %1145 = vmatprep.subr.mxu0 0.0
        %1146 = vmatpush2.msra.mxu0 0.0
        %1147 = vmatprep.subr.mxu0 0.0
        %1148 = vmatpush2.msra.mxu0 0.0
        %1149 = vmatprep.subr.mxu0 0.0
        %1150 = vmatpush2.msra.mxu0 0.0
        %1151 = vmatprep.subr.mxu0 0.0
        %1152 = vmatpush2.msra.mxu0 0.0
        %1153 = vmatprep.mubr.f32.mxu0 0.0
        %1154 = vmatmul.mubr.f32.gmra.mxu0 %v236
        %v1155 = vpop.f32.mrf.mxu0
        %v1156 = vadd.f32 0.0, %v1155
        %v1157 = vpop.f32.mrf.mxu0
        %v1158 = vadd.f32 0.0, %v1157
        %1159 = vmatprep.mubr.f32.mxu0 0.0
        %1160 = vmatmul.mubr.f32.gmra.mxu0 %v239
        %v1161 = vpop.f32.mrf.mxu0
        %v1162 = vadd.f32 0.0, %v1161
        %v1163 = vpop.f32.mrf.mxu0
        %v1164 = vadd.f32 0.0, %v1163
        %1165 = vdwg.mxu0
        %1166 = vmatprep.subr.mxu0 0.0
        %1167 = vmatpush1.msra.mxu0 0.0
        %1168 = vmatprep.subr.mxu0 0.0
        %1169 = vmatpush1.msra.mxu0 0.0
        %1170 = vmatprep.subr.mxu0 0.0
        %1171 = vmatpush1.msra.mxu0 0.0
        %1172 = vmatprep.subr.mxu0 0.0
        %1173 = vmatpush1.msra.mxu0 0.0
        %1174 = vmatprep.subr.mxu0 0.0
        %1175 = vmatpush1.msra.mxu0 0.0
        %1176 = vmatprep.subr.mxu0 0.0
        %1177 = vmatpush1.msra.mxu0 0.0
        %1178 = vmatprep.subr.mxu0 0.0
        %1179 = vmatpush1.msra.mxu0 0.0
        %1180 = vmatprep.subr.mxu0 0.0
        %1181 = vmatpush1.msra.mxu0 0.0
        %1182 = vmatprep.subr.mxu0 0.0
        %1183 = vmatpush1.msra.mxu0 0.0
        %1184 = vmatprep.subr.mxu0 0.0
        %1185 = vmatpush1.msra.mxu0 0.0
        %1186 = vmatprep.subr.mxu0 0.0
        %1187 = vmatpush1.msra.mxu0 0.0
        %1188 = vmatprep.subr.mxu0 0.0
        %1189 = vmatpush1.msra.mxu0 0.0
        %1190 = vmatprep.subr.mxu0 %v1004
        %1191 = vmatpush1.msra.mxu0 %v1001
        %1192 = vmatprep.subr.mxu0 %v977
        %1193 = vmatpush1.msra.mxu0 %v976
        %1194 = vmatprep.subr.mxu0 %v969
        %1195 = vmatpush1.msra.mxu0 %v968
        %1196 = vmatprep.subr.mxu0 %v961
        %1197 = vmatpush1.msra.mxu0 %v960
        %1198 = vmatprep.subr.mxu0 0.0
        %1199 = vmatpush2.msra.mxu0 0.0
        %1200 = vmatprep.subr.mxu0 0.0
        %1201 = vmatpush2.msra.mxu0 0.0
        %1202 = vmatprep.subr.mxu0 0.0
        %1203 = vmatpush2.msra.mxu0 0.0
        %1204 = vmatprep.subr.mxu0 0.0
        %1205 = vmatpush2.msra.mxu0 0.0
        %1206 = vmatprep.subr.mxu0 0.0
        %1207 = vmatpush2.msra.mxu0 0.0
        %1208 = vmatprep.subr.mxu0 0.0
        %1209 = vmatpush2.msra.mxu0 0.0
        %1210 = vmatprep.subr.mxu0 0.0
        %1211 = vmatpush2.msra.mxu0 0.0
        %1212 = vmatprep.subr.mxu0 0.0
        %1213 = vmatpush2.msra.mxu0 0.0
        %1214 = vmatprep.subr.mxu0 0.0
        %1215 = vmatpush2.msra.mxu0 0.0
        %1216 = vmatprep.subr.mxu0 0.0
        %1217 = vmatpush2.msra.mxu0 0.0
        %1218 = vmatprep.subr.mxu0 0.0
        %1219 = vmatpush2.msra.mxu0 0.0
        %1220 = vmatprep.subr.mxu0 0.0
        %1221 = vmatpush2.msra.mxu0 0.0
        %1222 = vmatprep.subr.mxu0 0.0
        %1223 = vmatpush2.msra.mxu0 0.0
        %1224 = vmatprep.subr.mxu0 0.0
        %1225 = vmatpush2.msra.mxu0 0.0
        %1226 = vmatprep.subr.mxu0 0.0
        %1227 = vmatpush2.msra.mxu0 0.0
        %1228 = vmatprep.subr.mxu0 0.0
        %1229 = vmatpush2.msra.mxu0 0.0
        %1230 = vmatprep.mubr.f32.mxu0 0.0
        %1231 = vmatmul.mubr.f32.gmra.mxu0 %v236
        %v1232 = vpop.f32.mrf.mxu0
        %v1233 = vadd.f32 0.0, %v1232
        %v1234 = vpop.f32.mrf.mxu0
        %v1235 = vadd.f32 0.0, %v1234
        %1236 = vmatprep.mubr.f32.mxu0 0.0
        %1237 = vmatmul.mubr.f32.gmra.mxu0 %v239
        %v1238 = vpop.f32.mrf.mxu0
        %v1239 = vadd.f32 0.0, %v1238
        %v1240 = vpop.f32.mrf.mxu0
        %v1241 = vadd.f32 0.0, %v1240
        %1242 = vdwg.mxu0
        %1243 = vmatprep.subr.mxu0 0.0
        %1244 = vmatpush1.msra.mxu0 0.0
        %1245 = vmatprep.subr.mxu0 0.0
        %1246 = vmatpush1.msra.mxu0 0.0
        %1247 = vmatprep.subr.mxu0 0.0
        %1248 = vmatpush1.msra.mxu0 0.0
        %1249 = vmatprep.subr.mxu0 0.0
        %1250 = vmatpush1.msra.mxu0 0.0
        %1251 = vmatprep.subr.mxu0 0.0
        %1252 = vmatpush1.msra.mxu0 0.0
        %1253 = vmatprep.subr.mxu0 0.0
        %1254 = vmatpush1.msra.mxu0 0.0
        %1255 = vmatprep.subr.mxu0 0.0
        %1256 = vmatpush1.msra.mxu0 0.0
        %1257 = vmatprep.subr.mxu0 0.0
        %1258 = vmatpush1.msra.mxu0 0.0
        %1259 = vmatprep.subr.mxu0 0.0
        %1260 = vmatpush1.msra.mxu0 0.0
        %1261 = vmatprep.subr.mxu0 0.0
        %1262 = vmatpush1.msra.mxu0 0.0
        %1263 = vmatprep.subr.mxu0 0.0
        %1264 = vmatpush1.msra.mxu0 0.0
        %1265 = vmatprep.subr.mxu0 0.0
        %1266 = vmatpush1.msra.mxu0 0.0
        %1267 = vmatprep.subr.mxu0 %v1010
        %1268 = vmatpush1.msra.mxu0 %v1007
        %1269 = vmatprep.subr.mxu0 %v979
        %1270 = vmatpush1.msra.mxu0 %v978
        %1271 = vmatprep.subr.mxu0 %v971
        %1272 = vmatpush1.msra.mxu0 %v970
        %1273 = vmatprep.subr.mxu0 %v963
        %1274 = vmatpush1.msra.mxu0 %v962
        %1275 = vmatprep.subr.mxu0 0.0
        %1276 = vmatpush2.msra.mxu0 0.0
        %1277 = vmatprep.subr.mxu0 0.0
        %1278 = vmatpush2.msra.mxu0 0.0
        %1279 = vmatprep.subr.mxu0 0.0
        %1280 = vmatpush2.msra.mxu0 0.0
        %1281 = vmatprep.subr.mxu0 0.0
        %1282 = vmatpush2.msra.mxu0 0.0
        %1283 = vmatprep.subr.mxu0 0.0
        %1284 = vmatpush2.msra.mxu0 0.0
        %1285 = vmatprep.subr.mxu0 0.0
        %1286 = vmatpush2.msra.mxu0 0.0
        %1287 = vmatprep.subr.mxu0 0.0
        %1288 = vmatpush2.msra.mxu0 0.0
        %1289 = vmatprep.subr.mxu0 0.0
        %1290 = vmatpush2.msra.mxu0 0.0
        %1291 = vmatprep.subr.mxu0 0.0
        %1292 = vmatpush2.msra.mxu0 0.0
        %1293 = vmatprep.subr.mxu0 0.0
        %1294 = vmatpush2.msra.mxu0 0.0
        %1295 = vmatprep.subr.mxu0 0.0
        %1296 = vmatpush2.msra.mxu0 0.0
        %1297 = vmatprep.subr.mxu0 0.0
        %1298 = vmatpush2.msra.mxu0 0.0
        %1299 = vmatprep.subr.mxu0 0.0
        %1300 = vmatpush2.msra.mxu0 0.0
        %1301 = vmatprep.subr.mxu0 0.0
        %1302 = vmatpush2.msra.mxu0 0.0
        %1303 = vmatprep.subr.mxu0 0.0
        %1304 = vmatpush2.msra.mxu0 0.0
        %1305 = vmatprep.subr.mxu0 0.0
        %1306 = vmatpush2.msra.mxu0 0.0
        %1307 = vmatprep.mubr.f32.mxu0 0.0
        %1308 = vmatmul.mubr.f32.gmra.mxu0 %v236
        %v1309 = vpop.f32.mrf.mxu0
        %v1310 = vadd.f32 0.0, %v1309
        %v1311 = vpop.f32.mrf.mxu0
        %v1312 = vadd.f32 0.0, %v1311
        %1313 = vmatprep.mubr.f32.mxu0 0.0
        %1314 = vmatmul.mubr.f32.gmra.mxu0 %v239
        %v1315 = vpop.f32.mrf.mxu0
        %v1316 = vadd.f32 0.0, %v1315
        %v1317 = vpop.f32.mrf.mxu0
        %v1318 = vadd.f32 0.0, %v1317
        %1319 = vdwg.mxu0
        %v1320 = vmax.f32 %v939, %v1079
        %v1321 = vmax.f32 %v940, %v1081
        %v1322 = vmax.f32 %v941, %v1156
        %v1323 = vmax.f32 %v942, %v1158
        %v1324 = vmax.f32 %v943, %v1233
        %v1325 = vmax.f32 %v944, %v1235
        %v1326 = vmax.f32 %v945, %v1310
        %v1327 = vmax.f32 %v946, %v1312
        %v1328 = vmax.f32 %v947, %v1085
        %v1329 = vmax.f32 %v948, %v1087
        %v1330 = vmax.f32 %v949, %v1162
        %v1331 = vmax.f32 %v950, %v1164
        %v1332 = vmax.f32 %v951, %v1239
        %v1333 = vmax.f32 %v952, %v1241
        %v1334 = vmax.f32 %v953, %v1316
        %v1335 = vmax.f32 %v954, %v1318
        %s1336 = scalar_lea.vmem %s197, 768
        %v1337 = vld [vmem:[%s1336] sm:$0xff]
        %v1338 = vld [vmem:[%s1336 + $0x8] sm:$0xff]
        %v1339 = vld [vmem:[%s1336 + $0x10] sm:$0xff]
        %v1340 = vld [vmem:[%s1336 + $0x18] sm:$0xff]
        %v1341 = vld [vmem:[%s1336 + $0x20] sm:$0xff]
        %v1342 = vld [vmem:[%s1336 + $0x28] sm:$0xff]
        %v1343 = vld [vmem:[%s1336 + $0x30] sm:$0xff]
        %v1344 = vld [vmem:[%s1336 + $0x38] sm:$0xff]
        %v1345 = vld [vmem:[%s1336 + $0x40] sm:$0xff]
        %v1346 = vld [vmem:[%s1336 + $0x48] sm:$0xff]
        %v1347 = vld [vmem:[%s1336 + $0x50] sm:$0xff]
        %v1348 = vld [vmem:[%s1336 + $0x58] sm:$0xff]
        %v1349 = vld [vmem:[%s1336 + $0x60] sm:$0xff]
        %v1350 = vld [vmem:[%s1336 + $0x68] sm:$0xff]
        %v1351 = vld [vmem:[%s1336 + $0x70] sm:$0xff]
        %v1352 = vld [vmem:[%s1336 + $0x78] sm:$0xff]
        %v1353 = vld [vmem:[%s1336 + $0x80] sm:$0xff]
        %v1354 = vld [vmem:[%s1336 + $0x88] sm:$0xff]
        %v1355 = vld [vmem:[%s1336 + $0x90] sm:$0xff]
        %v1356 = vld [vmem:[%s1336 + $0x98] sm:$0xff]
        %v1357 = vld [vmem:[%s1336 + $0xa0] sm:$0xff]
        %v1358 = vld [vmem:[%s1336 + $0xa8] sm:$0xff]
        %v1359 = vld [vmem:[%s1336 + $0xb0] sm:$0xff]
        %v1360 = vld [vmem:[%s1336 + $0xb8] sm:$0xff]
        %v1361 = vld [vmem:[%s1336 + $0xc0] sm:$0x7]
        %v1362 = vld [vmem:[%s1336 + $0xc8] sm:$0x7]
        %v1363 = vld [vmem:[%s1336 + $0xd0] sm:$0x7]
        %v1364 = vld [vmem:[%s1336 + $0xd8] sm:$0x7]
        %v1365 = vld [vmem:[%s1336 + $0xe0] sm:$0x7]
        %v1366 = vld [vmem:[%s1336 + $0xe8] sm:$0x7]
        %v1367 = vld [vmem:[%s1336 + $0xf0] sm:$0x7]
        %v1368 = vld [vmem:[%s1336 + $0xf8] sm:$0x7]
        %v1370 = vsel %vm241, %v1361, 0
        %v1373 = vsel %vm241, %v1362, 0
        %v1376 = vsel %vm241, %v1363, 0
        %v1379 = vsel %vm241, %v1364, 0
        %v1382 = vsel %vm241, %v1365, 0
        %v1385 = vsel %vm241, %v1366, 0
        %v1388 = vsel %vm241, %v1367, 0
        %v1391 = vsel %vm241, %v1368, 0
        %1393 = vmatprep.subr.mxu0 0.0
        %1394 = vmatpush1.msra.mxu0 0.0
        %1395 = vmatprep.subr.mxu0 0.0
        %1396 = vmatpush1.msra.mxu0 0.0
        %1397 = vmatprep.subr.mxu0 0.0
        %1398 = vmatpush1.msra.mxu0 0.0
        %1399 = vmatprep.subr.mxu0 0.0
        %1400 = vmatpush1.msra.mxu0 0.0
        %1401 = vmatprep.subr.mxu0 0.0
        %1402 = vmatpush1.msra.mxu0 0.0
        %1403 = vmatprep.subr.mxu0 0.0
        %1404 = vmatpush1.msra.mxu0 0.0
        %1405 = vmatprep.subr.mxu0 0.0
        %1406 = vmatpush1.msra.mxu0 0.0
        %1407 = vmatprep.subr.mxu0 0.0
        %1408 = vmatpush1.msra.mxu0 0.0
        %1409 = vmatprep.subr.mxu0 0.0
        %1410 = vmatpush1.msra.mxu0 0.0
        %1411 = vmatprep.subr.mxu0 0.0
        %1412 = vmatpush1.msra.mxu0 0.0
        %1413 = vmatprep.subr.mxu0 0.0
        %1414 = vmatpush1.msra.mxu0 0.0
        %1415 = vmatprep.subr.mxu0 0.0
        %1416 = vmatpush1.msra.mxu0 0.0
        %1417 = vmatprep.subr.mxu0 %v1373
        %1418 = vmatpush1.msra.mxu0 %v1370
        %1419 = vmatprep.subr.mxu0 %v1354
        %1420 = vmatpush1.msra.mxu0 %v1353
        %1421 = vmatprep.subr.mxu0 %v1346
        %1422 = vmatpush1.msra.mxu0 %v1345
        %1423 = vmatprep.subr.mxu0 %v1338
        %1424 = vmatpush1.msra.mxu0 %v1337
        %1425 = vmatprep.subr.mxu0 0.0
        %1426 = vmatpush2.msra.mxu0 0.0
        %1427 = vmatprep.subr.mxu0 0.0
        %1428 = vmatpush2.msra.mxu0 0.0
        %1429 = vmatprep.subr.mxu0 0.0
        %1430 = vmatpush2.msra.mxu0 0.0
        %1431 = vmatprep.subr.mxu0 0.0
        %1432 = vmatpush2.msra.mxu0 0.0
        %1433 = vmatprep.subr.mxu0 0.0
        %1434 = vmatpush2.msra.mxu0 0.0
        %1435 = vmatprep.subr.mxu0 0.0
        %1436 = vmatpush2.msra.mxu0 0.0
        %1437 = vmatprep.subr.mxu0 0.0
        %1438 = vmatpush2.msra.mxu0 0.0
        %1439 = vmatprep.subr.mxu0 0.0
        %1440 = vmatpush2.msra.mxu0 0.0
        %1441 = vmatprep.subr.mxu0 0.0
        %1442 = vmatpush2.msra.mxu0 0.0
        %1443 = vmatprep.subr.mxu0 0.0
        %1444 = vmatpush2.msra.mxu0 0.0
        %1445 = vmatprep.subr.mxu0 0.0
        %1446 = vmatpush2.msra.mxu0 0.0
        %1447 = vmatprep.subr.mxu0 0.0
        %1448 = vmatpush2.msra.mxu0 0.0
        %1449 = vmatprep.subr.mxu0 0.0
        %1450 = vmatpush2.msra.mxu0 0.0
        %1451 = vmatprep.subr.mxu0 0.0
        %1452 = vmatpush2.msra.mxu0 0.0
        %1453 = vmatprep.subr.mxu0 0.0
        %1454 = vmatpush2.msra.mxu0 0.0
        %1455 = vmatprep.subr.mxu0 0.0
        %1456 = vmatpush2.msra.mxu0 0.0
        %1457 = vmatprep.mubr.f32.mxu0 0.0
        %1458 = vmatmul.mubr.f32.gmra.mxu0 %v236
        %v1459 = vpop.f32.mrf.mxu0
        %v1460 = vadd.f32 0.0, %v1459
        %v1461 = vpop.f32.mrf.mxu0
        %v1462 = vadd.f32 0.0, %v1461
        %1463 = vmatprep.mubr.f32.mxu0 0.0
        %1464 = vmatmul.mubr.f32.gmra.mxu0 %v239
        %v1465 = vpop.f32.mrf.mxu0
        %v1466 = vadd.f32 0.0, %v1465
        %v1467 = vpop.f32.mrf.mxu0
        %v1468 = vadd.f32 0.0, %v1467
        %1469 = vdwg.mxu0
        %1470 = vmatprep.subr.mxu0 0.0
        %1471 = vmatpush1.msra.mxu0 0.0
        %1472 = vmatprep.subr.mxu0 0.0
        %1473 = vmatpush1.msra.mxu0 0.0
        %1474 = vmatprep.subr.mxu0 0.0
        %1475 = vmatpush1.msra.mxu0 0.0
        %1476 = vmatprep.subr.mxu0 0.0
        %1477 = vmatpush1.msra.mxu0 0.0
        %1478 = vmatprep.subr.mxu0 0.0
        %1479 = vmatpush1.msra.mxu0 0.0
        %1480 = vmatprep.subr.mxu0 0.0
        %1481 = vmatpush1.msra.mxu0 0.0
        %1482 = vmatprep.subr.mxu0 0.0
        %1483 = vmatpush1.msra.mxu0 0.0
        %1484 = vmatprep.subr.mxu0 0.0
        %1485 = vmatpush1.msra.mxu0 0.0
        %1486 = vmatprep.subr.mxu0 0.0
        %1487 = vmatpush1.msra.mxu0 0.0
        %1488 = vmatprep.subr.mxu0 0.0
        %1489 = vmatpush1.msra.mxu0 0.0
        %1490 = vmatprep.subr.mxu0 0.0
        %1491 = vmatpush1.msra.mxu0 0.0
        %1492 = vmatprep.subr.mxu0 0.0
        %1493 = vmatpush1.msra.mxu0 0.0
        %1494 = vmatprep.subr.mxu0 %v1379
        %1495 = vmatpush1.msra.mxu0 %v1376
        %1496 = vmatprep.subr.mxu0 %v1356
        %1497 = vmatpush1.msra.mxu0 %v1355
        %1498 = vmatprep.subr.mxu0 %v1348
        %1499 = vmatpush1.msra.mxu0 %v1347
        %1500 = vmatprep.subr.mxu0 %v1340
        %1501 = vmatpush1.msra.mxu0 %v1339
        %1502 = vmatprep.subr.mxu0 0.0
        %1503 = vmatpush2.msra.mxu0 0.0
        %1504 = vmatprep.subr.mxu0 0.0
        %1505 = vmatpush2.msra.mxu0 0.0
        %1506 = vmatprep.subr.mxu0 0.0
        %1507 = vmatpush2.msra.mxu0 0.0
        %1508 = vmatprep.subr.mxu0 0.0
        %1509 = vmatpush2.msra.mxu0 0.0
        %1510 = vmatprep.subr.mxu0 0.0
        %1511 = vmatpush2.msra.mxu0 0.0
        %1512 = vmatprep.subr.mxu0 0.0
        %1513 = vmatpush2.msra.mxu0 0.0
        %1514 = vmatprep.subr.mxu0 0.0
        %1515 = vmatpush2.msra.mxu0 0.0
        %1516 = vmatprep.subr.mxu0 0.0
        %1517 = vmatpush2.msra.mxu0 0.0
        %1518 = vmatprep.subr.mxu0 0.0
        %1519 = vmatpush2.msra.mxu0 0.0
        %1520 = vmatprep.subr.mxu0 0.0
        %1521 = vmatpush2.msra.mxu0 0.0
        %1522 = vmatprep.subr.mxu0 0.0
        %1523 = vmatpush2.msra.mxu0 0.0
        %1524 = vmatprep.subr.mxu0 0.0
        %1525 = vmatpush2.msra.mxu0 0.0
        %1526 = vmatprep.subr.mxu0 0.0
        %1527 = vmatpush2.msra.mxu0 0.0
        %1528 = vmatprep.subr.mxu0 0.0
        %1529 = vmatpush2.msra.mxu0 0.0
        %1530 = vmatprep.subr.mxu0 0.0
        %1531 = vmatpush2.msra.mxu0 0.0
        %1532 = vmatprep.subr.mxu0 0.0
        %1533 = vmatpush2.msra.mxu0 0.0
        %1534 = vmatprep.mubr.f32.mxu0 0.0
        %1535 = vmatmul.mubr.f32.gmra.mxu0 %v236
        %v1536 = vpop.f32.mrf.mxu0
        %v1537 = vadd.f32 0.0, %v1536
        %v1538 = vpop.f32.mrf.mxu0
        %v1539 = vadd.f32 0.0, %v1538
        %1540 = vmatprep.mubr.f32.mxu0 0.0
        %1541 = vmatmul.mubr.f32.gmra.mxu0 %v239
        %v1542 = vpop.f32.mrf.mxu0
        %v1543 = vadd.f32 0.0, %v1542
        %v1544 = vpop.f32.mrf.mxu0
        %v1545 = vadd.f32 0.0, %v1544
        %1546 = vdwg.mxu0
        %1547 = vmatprep.subr.mxu0 0.0
        %1548 = vmatpush1.msra.mxu0 0.0
        %1549 = vmatprep.subr.mxu0 0.0
        %1550 = vmatpush1.msra.mxu0 0.0
        %1551 = vmatprep.subr.mxu0 0.0
        %1552 = vmatpush1.msra.mxu0 0.0
        %1553 = vmatprep.subr.mxu0 0.0
        %1554 = vmatpush1.msra.mxu0 0.0
        %1555 = vmatprep.subr.mxu0 0.0
        %1556 = vmatpush1.msra.mxu0 0.0
        %1557 = vmatprep.subr.mxu0 0.0
        %1558 = vmatpush1.msra.mxu0 0.0
        %1559 = vmatprep.subr.mxu0 0.0
        %1560 = vmatpush1.msra.mxu0 0.0
        %1561 = vmatprep.subr.mxu0 0.0
        %1562 = vmatpush1.msra.mxu0 0.0
        %1563 = vmatprep.subr.mxu0 0.0
        %1564 = vmatpush1.msra.mxu0 0.0
        %1565 = vmatprep.subr.mxu0 0.0
        %1566 = vmatpush1.msra.mxu0 0.0
        %1567 = vmatprep.subr.mxu0 0.0
        %1568 = vmatpush1.msra.mxu0 0.0
        %1569 = vmatprep.subr.mxu0 0.0
        %1570 = vmatpush1.msra.mxu0 0.0
        %1571 = vmatprep.subr.mxu0 %v1385
        %1572 = vmatpush1.msra.mxu0 %v1382
        %1573 = vmatprep.subr.mxu0 %v1358
        %1574 = vmatpush1.msra.mxu0 %v1357
        %1575 = vmatprep.subr.mxu0 %v1350
        %1576 = vmatpush1.msra.mxu0 %v1349
        %1577 = vmatprep.subr.mxu0 %v1342
        %1578 = vmatpush1.msra.mxu0 %v1341
        %1579 = vmatprep.subr.mxu0 0.0
        %1580 = vmatpush2.msra.mxu0 0.0
        %1581 = vmatprep.subr.mxu0 0.0
        %1582 = vmatpush2.msra.mxu0 0.0
        %1583 = vmatprep.subr.mxu0 0.0
        %1584 = vmatpush2.msra.mxu0 0.0
        %1585 = vmatprep.subr.mxu0 0.0
        %1586 = vmatpush2.msra.mxu0 0.0
        %1587 = vmatprep.subr.mxu0 0.0
        %1588 = vmatpush2.msra.mxu0 0.0
        %1589 = vmatprep.subr.mxu0 0.0
        %1590 = vmatpush2.msra.mxu0 0.0
        %1591 = vmatprep.subr.mxu0 0.0
        %1592 = vmatpush2.msra.mxu0 0.0
        %1593 = vmatprep.subr.mxu0 0.0
        %1594 = vmatpush2.msra.mxu0 0.0
        %1595 = vmatprep.subr.mxu0 0.0
        %1596 = vmatpush2.msra.mxu0 0.0
        %1597 = vmatprep.subr.mxu0 0.0
        %1598 = vmatpush2.msra.mxu0 0.0
        %1599 = vmatprep.subr.mxu0 0.0
        %1600 = vmatpush2.msra.mxu0 0.0
        %1601 = vmatprep.subr.mxu0 0.0
        %1602 = vmatpush2.msra.mxu0 0.0
        %1603 = vmatprep.subr.mxu0 0.0
        %1604 = vmatpush2.msra.mxu0 0.0
        %1605 = vmatprep.subr.mxu0 0.0
        %1606 = vmatpush2.msra.mxu0 0.0
        %1607 = vmatprep.subr.mxu0 0.0
        %1608 = vmatpush2.msra.mxu0 0.0
        %1609 = vmatprep.subr.mxu0 0.0
        %1610 = vmatpush2.msra.mxu0 0.0
        %1611 = vmatprep.mubr.f32.mxu0 0.0
        %1612 = vmatmul.mubr.f32.gmra.mxu0 %v236
        %v1613 = vpop.f32.mrf.mxu0
        %v1614 = vadd.f32 0.0, %v1613
        %v1615 = vpop.f32.mrf.mxu0
        %v1616 = vadd.f32 0.0, %v1615
        %1617 = vmatprep.mubr.f32.mxu0 0.0
        %1618 = vmatmul.mubr.f32.gmra.mxu0 %v239
        %v1619 = vpop.f32.mrf.mxu0
        %v1620 = vadd.f32 0.0, %v1619
        %v1621 = vpop.f32.mrf.mxu0
        %v1622 = vadd.f32 0.0, %v1621
        %1623 = vdwg.mxu0
        %1624 = vmatprep.subr.mxu0 0.0
        %1625 = vmatpush1.msra.mxu0 0.0
        %1626 = vmatprep.subr.mxu0 0.0
        %1627 = vmatpush1.msra.mxu0 0.0
        %1628 = vmatprep.subr.mxu0 0.0
        %1629 = vmatpush1.msra.mxu0 0.0
        %1630 = vmatprep.subr.mxu0 0.0
        %1631 = vmatpush1.msra.mxu0 0.0
        %1632 = vmatprep.subr.mxu0 0.0
        %1633 = vmatpush1.msra.mxu0 0.0
        %1634 = vmatprep.subr.mxu0 0.0
        %1635 = vmatpush1.msra.mxu0 0.0
        %1636 = vmatprep.subr.mxu0 0.0
        %1637 = vmatpush1.msra.mxu0 0.0
        %1638 = vmatprep.subr.mxu0 0.0
        %1639 = vmatpush1.msra.mxu0 0.0
        %1640 = vmatprep.subr.mxu0 0.0
        %1641 = vmatpush1.msra.mxu0 0.0
        %1642 = vmatprep.subr.mxu0 0.0
        %1643 = vmatpush1.msra.mxu0 0.0
        %1644 = vmatprep.subr.mxu0 0.0
        %1645 = vmatpush1.msra.mxu0 0.0
        %1646 = vmatprep.subr.mxu0 0.0
        %1647 = vmatpush1.msra.mxu0 0.0
        %1648 = vmatprep.subr.mxu0 %v1391
        %1649 = vmatpush1.msra.mxu0 %v1388
        %1650 = vmatprep.subr.mxu0 %v1360
        %1651 = vmatpush1.msra.mxu0 %v1359
        %1652 = vmatprep.subr.mxu0 %v1352
        %1653 = vmatpush1.msra.mxu0 %v1351
        %1654 = vmatprep.subr.mxu0 %v1344
        %1655 = vmatpush1.msra.mxu0 %v1343
        %1656 = vmatprep.subr.mxu0 0.0
        %1657 = vmatpush2.msra.mxu0 0.0
        %1658 = vmatprep.subr.mxu0 0.0
        %1659 = vmatpush2.msra.mxu0 0.0
        %1660 = vmatprep.subr.mxu0 0.0
        %1661 = vmatpush2.msra.mxu0 0.0
        %1662 = vmatprep.subr.mxu0 0.0
        %1663 = vmatpush2.msra.mxu0 0.0
        %1664 = vmatprep.subr.mxu0 0.0
        %1665 = vmatpush2.msra.mxu0 0.0
        %1666 = vmatprep.subr.mxu0 0.0
        %1667 = vmatpush2.msra.mxu0 0.0
        %1668 = vmatprep.subr.mxu0 0.0
        %1669 = vmatpush2.msra.mxu0 0.0
        %1670 = vmatprep.subr.mxu0 0.0
        %1671 = vmatpush2.msra.mxu0 0.0
        %1672 = vmatprep.subr.mxu0 0.0
        %1673 = vmatpush2.msra.mxu0 0.0
        %1674 = vmatprep.subr.mxu0 0.0
        %1675 = vmatpush2.msra.mxu0 0.0
        %1676 = vmatprep.subr.mxu0 0.0
        %1677 = vmatpush2.msra.mxu0 0.0
        %1678 = vmatprep.subr.mxu0 0.0
        %1679 = vmatpush2.msra.mxu0 0.0
        %1680 = vmatprep.subr.mxu0 0.0
        %1681 = vmatpush2.msra.mxu0 0.0
        %1682 = vmatprep.subr.mxu0 0.0
        %1683 = vmatpush2.msra.mxu0 0.0
        %1684 = vmatprep.subr.mxu0 0.0
        %1685 = vmatpush2.msra.mxu0 0.0
        %1686 = vmatprep.subr.mxu0 0.0
        %1687 = vmatpush2.msra.mxu0 0.0
        %1688 = vmatprep.mubr.f32.mxu0 0.0
        %1689 = vmatmul.mubr.f32.gmra.mxu0 %v236
        %v1690 = vpop.f32.mrf.mxu0
        %v1691 = vadd.f32 0.0, %v1690
        %v1692 = vpop.f32.mrf.mxu0
        %v1693 = vadd.f32 0.0, %v1692
        %1694 = vmatprep.mubr.f32.mxu0 0.0
        %1695 = vmatmul.mubr.f32.gmra.mxu0 %v239
        %v1696 = vpop.f32.mrf.mxu0
        %v1697 = vadd.f32 0.0, %v1696
        %v1698 = vpop.f32.mrf.mxu0
        %v1699 = vadd.f32 0.0, %v1698
        %1700 = vdwg.mxu0
        %v1701 = vmax.f32 %v1320, %v1460
        %v1702 = vmax.f32 %v1321, %v1462
        %v1703 = vmax.f32 %v1322, %v1537
        %v1704 = vmax.f32 %v1323, %v1539
        %v1705 = vmax.f32 %v1324, %v1614
        %v1706 = vmax.f32 %v1325, %v1616
        %v1707 = vmax.f32 %v1326, %v1691
        %v1708 = vmax.f32 %v1327, %v1693
        %v1709 = vmax.f32 %v1328, %v1466
        %v1710 = vmax.f32 %v1329, %v1468
        %v1711 = vmax.f32 %v1330, %v1543
        %v1712 = vmax.f32 %v1331, %v1545
        %v1713 = vmax.f32 %v1332, %v1620
        %v1714 = vmax.f32 %v1333, %v1622
        %v1715 = vmax.f32 %v1334, %v1697
        %v1716 = vmax.f32 %v1335, %v1699
        %v1717 = vld [vmem:[%s2] sm:$0xff]
        %v1718 = vld [vmem:[%s2 + $0x8] sm:$0xff]
        %1720 = vset.pattern.permute.xlu0 0
        %1721 = vperm.xlu0 %1720, %v1717
        %v1722 = vpop.permute.xlu0 %1721
        %1725 = vset.pattern.permute.xlu0 0
        %1726 = vperm.xlu0 %1725, %v1718
        %v1727 = vpop.permute.xlu0 %1726
        %v1729 = vadd.f32 %v1701, %v1722
        %v1730 = vadd.f32 %v1702, %v1722
        %v1731 = vadd.f32 %v1703, %v1722
        %v1732 = vadd.f32 %v1704, %v1722
        %v1733 = vadd.f32 %v1705, %v1722
        %v1734 = vadd.f32 %v1706, %v1722
        %v1735 = vadd.f32 %v1707, %v1722
        %v1736 = vadd.f32 %v1708, %v1722
        %v1737 = vadd.f32 %v1709, %v1727
        %v1738 = vadd.f32 %v1710, %v1727
        %v1739 = vadd.f32 %v1711, %v1727
        %v1740 = vadd.f32 %v1712, %v1727
        %v1741 = vadd.f32 %v1713, %v1727
        %v1742 = vadd.f32 %v1714, %v1727
        %v1743 = vadd.f32 %v1715, %v1727
        %v1744 = vadd.f32 %v1716, %v1727
        %v1745 = vmax.f32 %v1729, 0.0
        %v1746 = vmax.f32 %v1730, 0.0
        %v1747 = vmax.f32 %v1731, 0.0
        %v1748 = vmax.f32 %v1732, 0.0
        %v1749 = vmax.f32 %v1733, 0.0
        %v1750 = vmax.f32 %v1734, 0.0
        %v1751 = vmax.f32 %v1735, 0.0
        %v1752 = vmax.f32 %v1736, 0.0
        %v1753 = vmax.f32 %v1737, 0.0
        %v1754 = vmax.f32 %v1738, 0.0
        %v1755 = vmax.f32 %v1739, 0.0
        %v1756 = vmax.f32 %v1740, 0.0
        %v1757 = vmax.f32 %v1741, 0.0
        %v1758 = vmax.f32 %v1742, 0.0
        %v1759 = vmax.f32 %v1743, 0.0
        %v1760 = vmax.f32 %v1744, 0.0
        %1761 = vst [vmem:[%s188] sm:$0xff] %v1745
        %1762 = vst [vmem:[%s188 + $0x8] sm:$0xff] %v1746
        %1763 = vst [vmem:[%s188 + $0x10] sm:$0xff] %v1747
        %1764 = vst [vmem:[%s188 + $0x18] sm:$0xff] %v1748
        %1765 = vst [vmem:[%s188 + $0x20] sm:$0xff] %v1749
        %1766 = vst [vmem:[%s188 + $0x28] sm:$0xff] %v1750
        %1767 = vst [vmem:[%s188 + $0x30] sm:$0xff] %v1751
        %1768 = vst [vmem:[%s188 + $0x38] sm:$0xff] %v1752
        %1769 = vst [vmem:[%s188 + $0x40] sm:$0xff] %v1753
        %1770 = vst [vmem:[%s188 + $0x48] sm:$0xff] %v1754
        %1771 = vst [vmem:[%s188 + $0x50] sm:$0xff] %v1755
        %1772 = vst [vmem:[%s188 + $0x58] sm:$0xff] %v1756
        %1773 = vst [vmem:[%s188 + $0x60] sm:$0xff] %v1757
        %1774 = vst [vmem:[%s188 + $0x68] sm:$0xff] %v1758
        %1775 = vst [vmem:[%s188 + $0x70] sm:$0xff] %v1759
        %1776 = vst [vmem:[%s188 + $0x78] sm:$0xff] %v1760
        %s1777 = sand.u32 %s109, 1
        %s1778 = scalar_lea.sflag [#allocation3], %s1777
        %s1779 = sand.u32 %s109, 1
        %s1780 = smul.addr %s1779, 128
        %s1781 = scalar_lea.vmem [#allocation2], %s1780
        // Predicated region
        $region33: #{tpu_custom_call.1} parent=31 // pred_check
          %p1782 = pneg %p119
        $region34: #{tpu_custom_call.1} parent=31 // pred_check_branch
          %1784 = sbr.rel (%p1782) target = $region36
        $region35: #{tpu_custom_call.1} parent=31 // pred_region
          %s1785 = smul.u32 8, %s22
          %s1787 = ssub.s32 2048, 2048
          %1788 = vsyncadd %s1778, %s1787
          %s1789 = smul.addr %s21, 16
          %s1790 = sadd.s32 %s1785, %s1789
          %s1791 = smul.addr %s1790, 128
          %s1792 = scalar_lea.hbm %s3, %s1791
          %s1793 = sshll.u32 %s1781, 4
          %s1794 = int_to_ptr.vmem [resolvable:$true] %s1793
          %1799 = dma.vmem_to_hbm [thread:$0]  %s1794, 2048, %s1792, %s1778, 1024, 1024, 64
        $region36: #{tpu_custom_call.1} parent=31 // pred_fallthru
          _
      $region32: #{tpu_custom_call.1} parent=5 // pred_fallthru
        _
      %p1800 = scmp.le.s32.totalorder 2, %s12
      // Predicated region
      $region37: #{tpu_custom_call.1} parent=5 // pred_check
        %p1801 = pneg %p1800
      $region38: #{tpu_custom_call.1} parent=5 // pred_check_branch
        %1803 = sbr.rel (%p1801) target = $region40
      $region39: #{tpu_custom_call.1} parent=5 // pred_region
        %s1804 = ssub.s32 %s12, 2
        // Predicated region
        $region41: #{tpu_custom_call.1} parent=39 // pred_check
          %p1805 = pneg %p125
        $region42: #{tpu_custom_call.1} parent=39 // pred_check_branch
          %1807 = sbr.rel (%p1805) target = $region44
        $region43: #{tpu_custom_call.1} parent=39 // pred_region
          %s1808 = sand.u32 %s110, 1
          %s1809 = scalar_lea.sflag [#allocation3], %s1808
          %s1810 = sand.u32 %s110, 1
          %s1811 = smul.addr %s1810, 128
          %s1812 = scalar_lea.vmem [#allocation2], %s1811
          %1813 = dma.done %s1809, 2048
        $region44: #{tpu_custom_call.1} parent=39 // pred_fallthru
          _
      $region40: #{tpu_custom_call.1} parent=5 // pred_fallthru
        _
    $region6: #{tpu_custom_call.1} parent=1 // loop_footer
      %s16 = sadd.s32 1, %s12
    $region7: #{tpu_custom_call.1} parent=1 // loop_footer_branch
      %11 = sbr.rel target = $region3
    $region8: #{tpu_custom_call.1} parent=1 // loop_exit
      _
    %1814 = vsyncpa [#allocation3], 1
    %s1815 = scalar_lea.sflag [#allocation3], 1
    %1816 = vsyncpa %s1815, 1

</llo_original>
